<compile_context>
chip_gen: v7x
topology: tpu7x:2x2x1
jax: 0.10.0
libtpu: 0.0.40
codegen_flags: <defaults>
</compile_context>

<pallas_src>
import jax
import jax.numpy as jnp
import numpy as np
from jax import lax
from jax.experimental import pallas as pl
from jax.experimental.pallas import tpu as pltpu


def _cdiv(a, b):
    return (a + b - 1) // b


def garch11_kernel(r_ref, var0_ref, omega_ref, alpha_ref, beta_ref,
                   out_ref, mt_ref, pow_ref, carry_ref):
    """One grid step processes R blocks of L timesteps each.

    r_ref:     (R, L) f32 VMEM — returns shifted by one (r_shift[t]=returns[t-1])
    var0_ref:  (1,)  f32 SMEM — var(returns, ddof=1)
    omega_ref, alpha_ref, beta_ref: (1,) f32 SMEM — model parameters
    out_ref:   (R, L) f32 VMEM — sigma2 for these R*L timesteps
    mt_ref:    (L, L) f32 VMEM scratch — MT[j, i] = beta^(i-j) for i>=j else 0
    pow_ref:   (1, L) f32 VMEM scratch — pow[i] = beta^(i+1)
    carry_ref: (1, L) f32 VMEM scratch — previous finalized sigma2 block row
    """
    R, L = out_ref.shape
    step = pl.program_id(0)

    var0 = var0_ref[0]
    omega = omega_ref[0]
    alpha = alpha_ref[0]
    beta = beta_ref[0]

    # ---- one-time setup (persists in scratch across grid iterations) -------
    @pl.when(step == 0)
    def _():
        # beta^k via exp(k*log(beta)); assumes beta >= 0 (GARCH constraint).
        beta_11 = jnp.full((1, 1), beta, dtype=jnp.float32)
        logb = jnp.log(jnp.maximum(beta_11, jnp.float32(1e-37)))       # (1,1)
        jj = lax.broadcasted_iota(jnp.int32, (L, L), 0)                # row j
        ii = lax.broadcasted_iota(jnp.int32, (L, L), 1)                # col i
        diff = (ii - jj).astype(jnp.float32)
        mt_ref[...] = jnp.where(diff >= 0.0, jnp.exp(diff * logb), 0.0)
        ci = lax.broadcasted_iota(jnp.int32, (1, L), 1).astype(jnp.float32)
        pow_ref[...] = jnp.exp((ci + 1.0) * logb)                      # beta^(i+1)
        carry_ref[...] = jnp.zeros_like(carry_ref)                     # sigma2[-1] = 0

    # ---- build x = [var0, omega + alpha*r^2, ...] for this chunk (in-kernel) -
    r = r_ref[...]
    c = omega + alpha * (r * r)
    row_idx = lax.broadcasted_iota(jnp.int32, (R, L), 0)
    col_idx = lax.broadcasted_iota(jnp.int32, (R, L), 1)
    is_t0 = jnp.logical_and(step == 0,
                            jnp.logical_and(row_idx == 0, col_idx == 0))
    x = jnp.where(is_t0, var0, c)

    # ---- within-block partial sums: one MXU matmul for R*L timesteps -------
    p = jnp.dot(x, mt_ref[...], preferred_element_type=jnp.float32,
                precision=jax.lax.Precision.HIGHEST)                   # (R, L)

    # ---- short serial scan over the R block carries (VPU/XLU work) ---------
    colm = lax.broadcasted_iota(jnp.int32, (1, L), 1)
    last_mask = (colm == (L - 1)).astype(jnp.float32)                  # picks lane L-1
    powv = pow_ref[...]                                                # (1, L)
    prev_row = carry_ref[...]                                          # (1, L)
    for rrow in range(R):   # static unroll; R is small (8)
        carry = jnp.sum(prev_row * last_mask, axis=1, keepdims=True)   # (1, 1)
        row = p[rrow:rrow + 1, :] + carry * powv                       # (1, L)
        out_ref[rrow:rrow + 1, :] = row
        prev_row = row
    carry_ref[...] = prev_row


def garch11_forward(returns, omega, alpha, beta, *, block_len=256,
                    rows_per_step=8):
    """sigma2 for a single series.  block_len: 256 on v6e/v7x, 128 on v5e."""
    r = returns.astype(jnp.float32)
    T = r.shape[0]
    L = block_len
    R = rows_per_step
    nb = _cdiv(T, L)                 # number of L-blocks covering T
    nb_pad = _cdiv(nb, R) * R        # rows padded to a multiple of R
    pad = nb_pad * L - T

    # Hoisted: the variance reduction only.  The elementwise c-term stays in
    # the kernel (review: wrapper pre-scale is an anti-pattern).  The shift /
    # pad / reshape below is pure layout plumbing.
    # NOTE: T == 1 gives var(ddof=1) = NaN, matching torch — intentional.
    var0 = jnp.var(r, ddof=1).astype(jnp.float32)

    r_shift = jnp.concatenate([jnp.zeros((1,), jnp.float32), r[:-1]])
    r_blocks = jnp.pad(r_shift, (0, pad)).reshape(nb_pad, L)

    var0_a = var0.reshape(1)
    omega_a = jnp.asarray(omega, dtype=jnp.float32).reshape(1)
    alpha_a = jnp.asarray(alpha, dtype=jnp.float32).reshape(1)
    beta_a = jnp.asarray(beta, dtype=jnp.float32).reshape(1)

    out = pl.pallas_call(
        garch11_kernel,
        out_shape=jax.ShapeDtypeStruct((nb_pad, L), jnp.float32),
        grid=(nb_pad // R,),
        in_specs=[
            pl.BlockSpec((R, L), lambda i: (i, 0)),                  # r_blocks
            pl.BlockSpec(memory_space=pltpu.MemorySpace.SMEM),       # var0
            pl.BlockSpec(memory_space=pltpu.MemorySpace.SMEM),       # omega
            pl.BlockSpec(memory_space=pltpu.MemorySpace.SMEM),       # alpha
            pl.BlockSpec(memory_space=pltpu.MemorySpace.SMEM),       # beta
        ],
        out_specs=pl.BlockSpec((R, L), lambda i: (i, 0)),
        scratch_shapes=[
            pltpu.VMEM((L, L), jnp.float32),   # beta-power triangular matrix
            pltpu.VMEM((1, L), jnp.float32),   # beta^(i+1)
            pltpu.VMEM((1, L), jnp.float32),   # carry: previous finalized row
        ],
        compiler_params=pltpu.CompilerParams(
            # Grid axis carries the block-to-block recurrence -> sequential.
            dimension_semantics=("arbitrary",)),
    )(r_blocks, var0_a, omega_a, alpha_a, beta_a)

    return out.reshape(-1)[:T]


if __name__ == "__main__":
    key = jax.random.PRNGKey(0)
    omega, alpha, beta = 0.1, 0.1, 0.8

    def ref_garch(r_np):
        T = r_np.shape[0]
        ref = np.zeros(T, dtype=np.float64)
        ref[0] = r_np.var(ddof=1)
        for t in range(1, T):
            ref[t] = omega + alpha * r_np[t - 1] ** 2 + beta * ref[t - 1]
        return ref

    # Case A: tiny series, default L=256 (single grid step, single block row).
    # Case B: longer series, L=128 -> multiple block rows AND multiple grid
    #         steps, exercising the within-chunk and cross-chunk carry paths.
    for (T, L) in [(16, 256), (2000, 128)]:
        k = jax.random.fold_in(key, T)
        returns = jax.random.normal(k, (T,), dtype=jnp.float32)
        sigma2 = garch11_forward(returns, omega, alpha, beta, block_len=L)
        sigma2 = jax.block_until_ready(sigma2)

        ref = ref_garch(np.asarray(returns, dtype=np.float64))
        assert sigma2.shape == (T,) and sigma2.dtype == jnp.float32
        # Loose-ish tolerance: the blocked/matmul form reassociates the f32
        # arithmetic (and MXU multiply passes may be reduced precision);
        # structural bugs would exceed this by orders of magnitude.
        assert np.allclose(np.asarray(sigma2, dtype=np.float64), ref,
                           rtol=2e-2, atol=1e-3), (T, np.asarray(sigma2), ref)

    print("KERNEL_OK")
</pallas_src>

<mosaic_0001>
module attributes {stable_mosaic.version = 11 : i64} {
  func.func @garch11_kernel(%arg0: i32, %arg1: memref<8x256xf32, #tpu.memory_space<vmem>>, %arg2: memref<1xf32, #tpu.memory_space<smem>>, %arg3: memref<1xf32, #tpu.memory_space<smem>>, %arg4: memref<1xf32, #tpu.memory_space<smem>>, %arg5: memref<1xf32, #tpu.memory_space<smem>>, %arg6: memref<8x256xf32, #tpu.memory_space<vmem>>, %arg7: memref<256x256xf32, #tpu.memory_space<vmem>>, %arg8: memref<1x256xf32, #tpu.memory_space<vmem>>, %arg9: memref<1x256xf32, #tpu.memory_space<vmem>>) attributes {dimension_semantics = [#tpu.dimension_semantics<arbitrary>], iteration_bounds = array<i64: 1>, scalar_prefetch = 0 : i64, scratch_operands = 3 : i64, tpu.core_type = #tpu.core_type<tc>, window_params = [{transform_indices = @transform_0, window_bounds = array<i64: 8, 256>}, {transform_indices = @transform_1, window_bounds = array<i64: 1>}, {transform_indices = @transform_2, window_bounds = array<i64: 1>}, {transform_indices = @transform_3, window_bounds = array<i64: 1>}, {transform_indices = @transform_4, window_bounds = array<i64: 1>}, {transform_indices = @transform_5, window_bounds = array<i64: 8, 256>}]} {
    %c0 = arith.constant 0 : index
    %0 = memref.load %arg2[%c0] : memref<1xf32, #tpu.memory_space<smem>>
    %c0_0 = arith.constant 0 : index
    %1 = memref.load %arg3[%c0_0] : memref<1xf32, #tpu.memory_space<smem>>
    %c0_1 = arith.constant 0 : index
    %2 = memref.load %arg4[%c0_1] : memref<1xf32, #tpu.memory_space<smem>>
    %c0_2 = arith.constant 0 : index
    %3 = memref.load %arg5[%c0_2] : memref<1xf32, #tpu.memory_space<smem>>
    %c0_i32 = arith.constant 0 : i32
    %4 = arith.cmpi eq, %arg0, %c0_i32 : i32
    %5 = arith.extui %4 : i1 to i32
    %c0_i32_3 = arith.constant 0 : i32
    %6 = arith.cmpi ne, %5, %c0_i32_3 : i32
    scf.if %6 {
      %99 = vector.broadcast %3 : f32 to vector<1x1xf32>
      %cst_34 = arith.constant 9.99999991E-38 : f32
      %100 = vector.broadcast %cst_34 : f32 to vector<1x1xf32>
      %101 = arith.maximumf %99, %100 : vector<1x1xf32>
      %102 = math.log %101 : vector<1x1xf32>
      %103 = tpu.iota {dimensions = array<i32: 0>} : vector<256x256xi32>
      %104 = tpu.iota {dimensions = array<i32: 1>} : vector<256x256xi32>
      %105 = arith.subi %104, %103 : vector<256x256xi32>
      %106 = arith.sitofp %105 : vector<256x256xi32> to vector<256x256xf32>
      %cst_35 = arith.constant 0.000000e+00 : f32
      %107 = vector.broadcast %cst_35 : f32 to vector<256x256xf32>
      %108 = arith.cmpf oge, %106, %107 : vector<256x256xf32>
      %109 = vector.broadcast %102 : vector<1x1xf32> to vector<256x256xf32>
      %110 = arith.mulf %106, %109 : vector<256x256xf32>
      %111 = math.exp %110 : vector<256x256xf32>
      %cst_36 = arith.constant 0.000000e+00 : f32
      %112 = vector.broadcast %cst_36 : f32 to vector<256x256xf32>
      %113 = arith.select %108, %111, %112 : vector<256x256xi1>, vector<256x256xf32>
      %c0_37 = arith.constant 0 : index
      %c0_38 = arith.constant 0 : index
      %114 = vector.load %arg7[%c0_37, %c0_38] : memref<256x256xf32, #tpu.memory_space<vmem>>, vector<256x256xf32>
      tpu.vector_store %arg7[%c0_37, %c0_38], %113 {strides = array<i32>} : memref<256x256xf32, #tpu.memory_space<vmem>>, vector<256x256xf32>,
      %115 = tpu.iota {dimensions = array<i32: 1>} : vector<1x256xi32>
      %116 = arith.sitofp %115 : vector<1x256xi32> to vector<1x256xf32>
      %cst_39 = arith.constant 1.000000e+00 : f32
      %117 = vector.broadcast %cst_39 : f32 to vector<1x256xf32>
      %118 = arith.addf %116, %117 : vector<1x256xf32>
      %119 = vector.broadcast %102 : vector<1x1xf32> to vector<1x256xf32>
      %120 = arith.mulf %118, %119 : vector<1x256xf32>
      %121 = math.exp %120 : vector<1x256xf32>
      %c0_40 = arith.constant 0 : index
      %c0_41 = arith.constant 0 : index
      %122 = vector.load %arg8[%c0_40, %c0_41] : memref<1x256xf32, #tpu.memory_space<vmem>>, vector<1x256xf32>
      tpu.vector_store %arg8[%c0_40, %c0_41], %121 {strides = array<i32>} : memref<1x256xf32, #tpu.memory_space<vmem>>, vector<1x256xf32>,
      %cst_42 = arith.constant 0.000000e+00 : f32
      %123 = vector.broadcast %cst_42 : f32 to vector<1x256xf32>
      %c0_43 = arith.constant 0 : index
      %c0_44 = arith.constant 0 : index
      %124 = vector.load %arg9[%c0_43, %c0_44] : memref<1x256xf32, #tpu.memory_space<vmem>>, vector<1x256xf32>
      tpu.vector_store %arg9[%c0_43, %c0_44], %123 {strides = array<i32>} : memref<1x256xf32, #tpu.memory_space<vmem>>, vector<1x256xf32>,
    } else {
    }
    %c0_4 = arith.constant 0 : index
    %c0_5 = arith.constant 0 : index
    %7 = vector.load %arg1[%c0_4, %c0_5] : memref<8x256xf32, #tpu.memory_space<vmem>>, vector<8x256xf32>
    %8 = arith.mulf %7, %7 : vector<8x256xf32>
    %9 = vector.broadcast %2 : f32 to vector<8x256xf32>
    %10 = arith.mulf %9, %8 : vector<8x256xf32>
    %11 = vector.broadcast %1 : f32 to vector<8x256xf32>
    %12 = arith.addf %11, %10 : vector<8x256xf32>
    %13 = tpu.iota {dimensions = array<i32: 0>} : vector<8x256xi32>
    %14 = tpu.iota {dimensions = array<i32: 1>} : vector<8x256xi32>
    %c0_i32_6 = arith.constant 0 : i32
    %15 = arith.cmpi eq, %arg0, %c0_i32_6 : i32
    %c0_i32_7 = arith.constant 0 : i32
    %16 = vector.broadcast %c0_i32_7 : i32 to vector<8x256xi32>
    %17 = arith.cmpi eq, %13, %16 : vector<8x256xi32>
    %c0_i32_8 = arith.constant 0 : i32
    %18 = vector.broadcast %c0_i32_8 : i32 to vector<8x256xi32>
    %19 = arith.cmpi eq, %14, %18 : vector<8x256xi32>
    %20 = arith.andi %17, %19 : vector<8x256xi1>
    %21 = vector.broadcast %15 : i1 to vector<8x256xi1>
    %22 = arith.andi %21, %20 : vector<8x256xi1>
    %23 = vector.broadcast %0 : f32 to vector<8x256xf32>
    %24 = arith.select %22, %23, %12 : vector<8x256xi1>, vector<8x256xf32>
    %c0_9 = arith.constant 0 : index
    %c0_10 = arith.constant 0 : index
    %25 = vector.load %arg7[%c0_9, %c0_10] : memref<256x256xf32, #tpu.memory_space<vmem>>, vector<256x256xf32>
    %cst = arith.constant dense<0.000000e+00> : vector<8x256xf32>
    %26 = tpu.matmul %24, %25, %cst {dimension_numbers = #tpu.dot_dimension_numbers<[1], [0], [0], [1], [0, 0, 1, 1], [], []>, precision = #tpu.contract_precision<fp32>} : vector<8x256xf32>, vector<256x256xf32>, vector<8x256xf32> -> vector<8x256xf32>
    %27 = tpu.iota {dimensions = array<i32: 1>} : vector<1x256xi32>
    %c255_i32 = arith.constant 255 : i32
    %28 = vector.broadcast %c255_i32 : i32 to vector<1x256xi32>
    %29 = arith.cmpi eq, %27, %28 : vector<1x256xi32>
    %30 = arith.extui %29 : vector<1x256xi1> to vector<1x256xi32>
    %31 = arith.sitofp %30 : vector<1x256xi32> to vector<1x256xf32>
    %c0_11 = arith.constant 0 : index
    %c0_12 = arith.constant 0 : index
    %32 = vector.load %arg8[%c0_11, %c0_12] : memref<1x256xf32, #tpu.memory_space<vmem>>, vector<1x256xf32>
    %c0_13 = arith.constant 0 : index
    %c0_14 = arith.constant 0 : index
    %33 = vector.load %arg9[%c0_13, %c0_14] : memref<1x256xf32, #tpu.memory_space<vmem>>, vector<1x256xf32>
    %34 = arith.mulf %33, %31 : vector<1x256xf32>
    %cst_15 = arith.constant dense<0.000000e+00> : vector<1xf32>
    %35 = vector.multi_reduction <add>, %34, %cst_15 [1] : vector<1x256xf32> to vector<1xf32>
    %36 = vector.shape_cast %35 : vector<1xf32> to vector<1x1xf32>
    %37 = vector.extract_strided_slice %26 {offsets = [0, 0], sizes = [1, 256], strides = [1, 1]} : vector<8x256xf32> to vector<1x256xf32>
    %38 = vector.broadcast %36 : vector<1x1xf32> to vector<1x256xf32>
    %39 = arith.mulf %38, %32 : vector<1x256xf32>
    %40 = arith.addf %37, %39 : vector<1x256xf32>
    %c0_16 = arith.constant 0 : index
    %c0_17 = arith.constant 0 : index
    %41 = vector.load %arg6[%c0_16, %c0_17] : memref<8x256xf32, #tpu.memory_space<vmem>>, vector<1x256xf32>
    tpu.vector_store %arg6[%c0_16, %c0_17], %40 {strides = array<i32>} : memref<8x256xf32, #tpu.memory_space<vmem>>, vector<1x256xf32>,
    %42 = arith.mulf %40, %31 : vector<1x256xf32>
    %cst_18 = arith.constant dense<0.000000e+00> : vector<1xf32>
    %43 = vector.multi_reduction <add>, %42, %cst_18 [1] : vector<1x256xf32> to vector<1xf32>
    %44 = vector.shape_cast %43 : vector<1xf32> to vector<1x1xf32>
    %45 = vector.extract_strided_slice %26 {offsets = [1, 0], sizes = [1, 256], strides = [1, 1]} : vector<8x256xf32> to vector<1x256xf32>
    %46 = vector.broadcast %44 : vector<1x1xf32> to vector<1x256xf32>
    %47 = arith.mulf %46, %32 : vector<1x256xf32>
    %48 = arith.addf %45, %47 : vector<1x256xf32>
    %c1 = arith.constant 1 : index
    %c0_19 = arith.constant 0 : index
    %49 = vector.load %arg6[%c1, %c0_19] : memref<8x256xf32, #tpu.memory_space<vmem>>, vector<1x256xf32>
    tpu.vector_store %arg6[%c1, %c0_19], %48 {strides = array<i32>} : memref<8x256xf32, #tpu.memory_space<vmem>>, vector<1x256xf32>,
    %50 = arith.mulf %48, %31 : vector<1x256xf32>
    %cst_20 = arith.constant dense<0.000000e+00> : vector<1xf32>
    %51 = vector.multi_reduction <add>, %50, %cst_20 [1] : vector<1x256xf32> to vector<1xf32>
    %52 = vector.shape_cast %51 : vector<1xf32> to vector<1x1xf32>
    %53 = vector.extract_strided_slice %26 {offsets = [2, 0], sizes = [1, 256], strides = [1, 1]} : vector<8x256xf32> to vector<1x256xf32>
    %54 = vector.broadcast %52 : vector<1x1xf32> to vector<1x256xf32>
    %55 = arith.mulf %54, %32 : vector<1x256xf32>
    %56 = arith.addf %53, %55 : vector<1x256xf32>
    %c2 = arith.constant 2 : index
    %c0_21 = arith.constant 0 : index
    %57 = vector.load %arg6[%c2, %c0_21] : memref<8x256xf32, #tpu.memory_space<vmem>>, vector<1x256xf32>
    tpu.vector_store %arg6[%c2, %c0_21], %56 {strides = array<i32>} : memref<8x256xf32, #tpu.memory_space<vmem>>, vector<1x256xf32>,
    %58 = arith.mulf %56, %31 : vector<1x256xf32>
    %cst_22 = arith.constant dense<0.000000e+00> : vector<1xf32>
    %59 = vector.multi_reduction <add>, %58, %cst_22 [1] : vector<1x256xf32> to vector<1xf32>
    %60 = vector.shape_cast %59 : vector<1xf32> to vector<1x1xf32>
    %61 = vector.extract_strided_slice %26 {offsets = [3, 0], sizes = [1, 256], strides = [1, 1]} : vector<8x256xf32> to vector<1x256xf32>
    %62 = vector.broadcast %60 : vector<1x1xf32> to vector<1x256xf32>
    %63 = arith.mulf %62, %32 : vector<1x256xf32>
    %64 = arith.addf %61, %63 : vector<1x256xf32>
    %c3 = arith.constant 3 : index
    %c0_23 = arith.constant 0 : index
    %65 = vector.load %arg6[%c3, %c0_23] : memref<8x256xf32, #tpu.memory_space<vmem>>, vector<1x256xf32>
    tpu.vector_store %arg6[%c3, %c0_23], %64 {strides = array<i32>} : memref<8x256xf32, #tpu.memory_space<vmem>>, vector<1x256xf32>,
    %66 = arith.mulf %64, %31 : vector<1x256xf32>
    %cst_24 = arith.constant dense<0.000000e+00> : vector<1xf32>
    %67 = vector.multi_reduction <add>, %66, %cst_24 [1] : vector<1x256xf32> to vector<1xf32>
    %68 = vector.shape_cast %67 : vector<1xf32> to vector<1x1xf32>
    %69 = vector.extract_strided_slice %26 {offsets = [4, 0], sizes = [1, 256], strides = [1, 1]} : vector<8x256xf32> to vector<1x256xf32>
    %70 = vector.broadcast %68 : vector<1x1xf32> to vector<1x256xf32>
    %71 = arith.mulf %70, %32 : vector<1x256xf32>
    %72 = arith.addf %69, %71 : vector<1x256xf32>
    %c4 = arith.constant 4 : index
    %c0_25 = arith.constant 0 : index
    %73 = vector.load %arg6[%c4, %c0_25] : memref<8x256xf32, #tpu.memory_space<vmem>>, vector<1x256xf32>
    tpu.vector_store %arg6[%c4, %c0_25], %72 {strides = array<i32>} : memref<8x256xf32, #tpu.memory_space<vmem>>, vector<1x256xf32>,
    %74 = arith.mulf %72, %31 : vector<1x256xf32>
    %cst_26 = arith.constant dense<0.000000e+00> : vector<1xf32>
    %75 = vector.multi_reduction <add>, %74, %cst_26 [1] : vector<1x256xf32> to vector<1xf32>
    %76 = vector.shape_cast %75 : vector<1xf32> to vector<1x1xf32>
    %77 = vector.extract_strided_slice %26 {offsets = [5, 0], sizes = [1, 256], strides = [1, 1]} : vector<8x256xf32> to vector<1x256xf32>
    %78 = vector.broadcast %76 : vector<1x1xf32> to vector<1x256xf32>
    %79 = arith.mulf %78, %32 : vector<1x256xf32>
    %80 = arith.addf %77, %79 : vector<1x256xf32>
    %c5 = arith.constant 5 : index
    %c0_27 = arith.constant 0 : index
    %81 = vector.load %arg6[%c5, %c0_27] : memref<8x256xf32, #tpu.memory_space<vmem>>, vector<1x256xf32>
    tpu.vector_store %arg6[%c5, %c0_27], %80 {strides = array<i32>} : memref<8x256xf32, #tpu.memory_space<vmem>>, vector<1x256xf32>,
    %82 = arith.mulf %80, %31 : vector<1x256xf32>
    %cst_28 = arith.constant dense<0.000000e+00> : vector<1xf32>
    %83 = vector.multi_reduction <add>, %82, %cst_28 [1] : vector<1x256xf32> to vector<1xf32>
    %84 = vector.shape_cast %83 : vector<1xf32> to vector<1x1xf32>
    %85 = vector.extract_strided_slice %26 {offsets = [6, 0], sizes = [1, 256], strides = [1, 1]} : vector<8x256xf32> to vector<1x256xf32>
    %86 = vector.broadcast %84 : vector<1x1xf32> to vector<1x256xf32>
    %87 = arith.mulf %86, %32 : vector<1x256xf32>
    %88 = arith.addf %85, %87 : vector<1x256xf32>
    %c6 = arith.constant 6 : index
    %c0_29 = arith.constant 0 : index
    %89 = vector.load %arg6[%c6, %c0_29] : memref<8x256xf32, #tpu.memory_space<vmem>>, vector<1x256xf32>
    tpu.vector_store %arg6[%c6, %c0_29], %88 {strides = array<i32>} : memref<8x256xf32, #tpu.memory_space<vmem>>, vector<1x256xf32>,
    %90 = arith.mulf %88, %31 : vector<1x256xf32>
    %cst_30 = arith.constant dense<0.000000e+00> : vector<1xf32>
    %91 = vector.multi_reduction <add>, %90, %cst_30 [1] : vector<1x256xf32> to vector<1xf32>
    %92 = vector.shape_cast %91 : vector<1xf32> to vector<1x1xf32>
    %93 = vector.extract_strided_slice %26 {offsets = [7, 0], sizes = [1, 256], strides = [1, 1]} : vector<8x256xf32> to vector<1x256xf32>
    %94 = vector.broadcast %92 : vector<1x1xf32> to vector<1x256xf32>
    %95 = arith.mulf %94, %32 : vector<1x256xf32>
    %96 = arith.addf %93, %95 : vector<1x256xf32>
    %c7 = arith.constant 7 : index
    %c0_31 = arith.constant 0 : index
    %97 = vector.load %arg6[%c7, %c0_31] : memref<8x256xf32, #tpu.memory_space<vmem>>, vector<1x256xf32>
    tpu.vector_store %arg6[%c7, %c0_31], %96 {strides = array<i32>} : memref<8x256xf32, #tpu.memory_space<vmem>>, vector<1x256xf32>,
    %c0_32 = arith.constant 0 : index
    %c0_33 = arith.constant 0 : index
    %98 = vector.load %arg9[%c0_32, %c0_33] : memref<1x256xf32, #tpu.memory_space<vmem>>, vector<1x256xf32>
    tpu.vector_store %arg9[%c0_32, %c0_33], %96 {strides = array<i32>} : memref<1x256xf32, #tpu.memory_space<vmem>>, vector<1x256xf32>,
    return
  }
  func.func @transform_0(%arg0: i32) -> (i32, i32) {
    %c0_i32 = arith.constant 0 : i32
    %c0_i32_0 = arith.constant 0 : i32
    return %arg0, %c0_i32 : i32, i32
  }
  func.func @transform_1(%arg0: i32) -> i32 {
    %c0_i32 = arith.constant 0 : i32
    %c0_i32_0 = arith.constant 0 : i32
    return %c0_i32 : i32
  }
  func.func @transform_2(%arg0: i32) -> i32 {
    %c0_i32 = arith.constant 0 : i32
    %c0_i32_0 = arith.constant 0 : i32
    return %c0_i32 : i32
  }
  func.func @transform_3(%arg0: i32) -> i32 {
    %c0_i32 = arith.constant 0 : i32
    %c0_i32_0 = arith.constant 0 : i32
    return %c0_i32 : i32
  }
  func.func @transform_4(%arg0: i32) -> i32 {
    %c0_i32 = arith.constant 0 : i32
    %c0_i32_0 = arith.constant 0 : i32
    return %c0_i32 : i32
  }
  func.func @transform_5(%arg0: i32) -> (i32, i32) {
    %c0_i32 = arith.constant 0 : i32
    %c0_i32_0 = arith.constant 0 : i32
    return %arg0, %c0_i32 : i32, i32
  }
}

</mosaic_0001>

<llo_original>
// kernel: tpu_custom_call.1
$region0: #{tpu_custom_call.1}
  #allocation0 [shape = 'u32[]', space=smem, size = 0x4, offset = 0x4, fixed_abs, tag = 'smem constant byte address 0x4 - core index']
  #allocation1 [shape = 'u32[144,128]{1,0:T(1,128)}', space=vmem, size = 0x12000, scoped, tag = 'internal scratch']
  #allocation2 [shape = 'f32[256,256]{1,0:T(8,128)}', space=vmem, size = 0x40000, scoped, tag = 'scratch operand']
  #allocation3 [shape = 'f32[1,256]{1,0:T(1,128)}', space=vmem, size = 0x400, scoped, tag = 'scratch operand']
  #allocation4 [shape = 'f32[1,256]{1,0:T(1,128)}', space=vmem, size = 0x400, scoped, tag = 'scratch operand']
  #allocation5 [shape = 'f32[1]{0:T(128)S(6)}', space=smem, size = 0x200, scoped, tag = 'scoped memory for tpu_custom_call.1']
  #allocation6 [shape = 'f32[1]{0:T(128)S(6)}', space=smem, size = 0x200, scoped, tag = 'scoped memory for tpu_custom_call.1']
  #allocation7 [shape = 'f32[1]{0:T(128)S(6)}', space=smem, size = 0x200, scoped, tag = 'scoped memory for tpu_custom_call.1']
  #allocation8 [shape = 'f32[1]{0:T(128)S(6)}', space=smem, size = 0x200, scoped, tag = 'scoped memory for tpu_custom_call.1']
  %s0 = inlined_call_operand.hbm [shape: f32[8,256], index: 0, kind: input, shape index: {}]
  %s1 = inlined_call_operand.<no memory space> [shape: f32[1], index: 1, kind: input, shape index: {}]
  %s2 = inlined_call_operand.<no memory space> [shape: f32[1], index: 2, kind: input, shape index: {}]
  %s3 = inlined_call_operand.<no memory space> [shape: f32[1], index: 3, kind: input, shape index: {}]
  %s4 = inlined_call_operand.<no memory space> [shape: f32[1], index: 4, kind: input, shape index: {}]
  %s5 = inlined_call_operand.hbm [shape: f32[8,256], index: 5, kind: output, shape index: {}]
  %s6 = sld [smem:[#allocation0]]
  $region38: #{tpu_custom_call.1} parent=0
    _
  %s8 = ssub.s32 1, %s6
  %s9 = scalar_select 0, %s8, %s6
  %10 = sst [smem:[#allocation5]] %s1
  %11 = sst [smem:[#allocation6]] %s2
  %12 = sst [smem:[#allocation7]] %s3
  %13 = sst [smem:[#allocation8]] %s4
  $region1: #{tpu_custom_call.1} parent=0
    #allocation9 [shape = 'u8[8192]{0}', space=vmem, size = 0x2000, scoped, tag = 'input window, operand 0, single buffered']
    #allocation10 [shape = 's32[1]{0}', space=sflag, size = 0x4, scoped, tag = 'scoped memory for tpu_custom_call.1']
    #allocation11 [shape = 's32[1]{0}', space=sflag, size = 0x4, scoped, tag = 'scoped memory for tpu_custom_call.1']
    #allocation12 [shape = 'u8[8192]{0}', space=vmem, size = 0x2000, scoped, tag = 'output window, operand 0, single buffered']
    %14 = vsyncpa [#allocation10], 0
    %15 = vsyncpa [#allocation11], 0
    // Predicated region
    $region2: #{tpu_custom_call.1} parent=1 // pred_check
      _
    $region3: #{tpu_custom_call.1} parent=1 // pred_check_branch
      %17 = sbr.rel (0) target = $region5
    $region4: #{tpu_custom_call.1} parent=1 // pred_region
      %s19 = ssub.s32 256, 256
      %20 = vsyncadd [#allocation10], %s19
      %s22 = sshll.u32 [#allocation9], 4
      %s23 = int_to_ptr.vmem [resolvable:$true] %s22
      %25 = dma.hbm_to_vmem [thread:$0]  %s0, 256, %s23, [#allocation10]
    $region5: #{tpu_custom_call.1} parent=1 // pred_fallthru
      _
    // Predicated region
    $region6: #{tpu_custom_call.1} parent=1 // pred_check
      _
    $region7: #{tpu_custom_call.1} parent=1 // pred_check_branch
      %27 = sbr.rel (0) target = $region9
    $region8: #{tpu_custom_call.1} parent=1 // pred_region
      _
    $region9: #{tpu_custom_call.1} parent=1 // pred_fallthru
      _
    // Predicated region
    $region10: #{tpu_custom_call.1} parent=1 // pred_check
      _
    $region11: #{tpu_custom_call.1} parent=1 // pred_check_branch
      %29 = sbr.rel (0) target = $region13
    $region12: #{tpu_custom_call.1} parent=1 // pred_region
      _
    $region13: #{tpu_custom_call.1} parent=1 // pred_fallthru
      _
    // Predicated region
    $region14: #{tpu_custom_call.1} parent=1 // pred_check
      _
    $region15: #{tpu_custom_call.1} parent=1 // pred_check_branch
      %31 = sbr.rel (0) target = $region17
    $region16: #{tpu_custom_call.1} parent=1 // pred_region
      _
    $region17: #{tpu_custom_call.1} parent=1 // pred_fallthru
      _
    // Predicated region
    $region18: #{tpu_custom_call.1} parent=1 // pred_check
      _
    $region19: #{tpu_custom_call.1} parent=1 // pred_check_branch
      %33 = sbr.rel (0) target = $region21
    $region20: #{tpu_custom_call.1} parent=1 // pred_region
      _
    $region21: #{tpu_custom_call.1} parent=1 // pred_fallthru
      _
    // Predicated region
    $region22: #{tpu_custom_call.1} parent=1 // pred_check
      _
    $region23: #{tpu_custom_call.1} parent=1 // pred_check_branch
      %35 = sbr.rel (0) target = $region25
    $region24: #{tpu_custom_call.1} parent=1 // pred_region
      %36 = dma.done [#allocation10], 256
    $region25: #{tpu_custom_call.1} parent=1 // pred_fallthru
      _
    %s37 = sld [smem:[#allocation5]]
    %s38 = sld [smem:[#allocation6]]
    %s39 = sld [smem:[#allocation7]]
    %s40 = sld [smem:[#allocation8]]
    %p41 = scmp.eq.s32.totalorder 0, 0
    // Predicated region
    $region26: #{tpu_custom_call.1} parent=1 // pred_check
      %p42 = pneg %p41
    $region27: #{tpu_custom_call.1} parent=1 // pred_check_branch
      %44 = sbr.rel (%p42) target = $region29
    $region28: #{tpu_custom_call.1} parent=1 // pred_region
      %v45 = vstv %s40
      %v46 = vmax.f32 %v45, 1e-37
      %v47 = vlog2.pop %v46
      %v48 = vmul.f32 %v47, 0.6931472
      %v49 = vlaneseq
      %v50 = vshrl.u32 %v49, 7
      %v51 = vadd.s32 %v50, 8
      %v52 = vadd.s32 %v50, 16
      %v53 = vadd.s32 %v50, 24
      %v54 = vadd.s32 %v50, 32
      %v55 = vadd.s32 %v50, 40
      %v56 = vadd.s32 %v50, 48
      %v57 = vadd.s32 %v50, 56
      %v58 = vadd.s32 %v50, 64
      %v59 = vadd.s32 %v50, 72
      %v60 = vadd.s32 %v50, 80
      %v61 = vadd.s32 %v50, 88
      %v62 = vadd.s32 %v50, 96
      %v63 = vadd.s32 %v50, 104
      %v64 = vadd.s32 %v50, 112
      %v65 = vadd.s32 %v50, 120
      %v66 = vadd.s32 %v50, 128
      %v67 = vadd.s32 %v50, 136
      %v68 = vadd.s32 %v50, 144
      %v69 = vadd.s32 %v50, 152
      %v70 = vadd.s32 %v50, 160
      %v71 = vadd.s32 %v50, 168
      %v72 = vadd.s32 %v50, 176
      %v73 = vadd.s32 %v50, 184
      %v74 = vadd.s32 %v50, 192
      %v75 = vadd.s32 %v50, 200
      %v76 = vadd.s32 %v50, 208
      %v77 = vadd.s32 %v50, 216
      %v78 = vadd.s32 %v50, 224
      %v79 = vadd.s32 %v50, 232
      %v80 = vadd.s32 %v50, 240
      %v81 = vadd.s32 %v50, 248
      %v82 = vlaneseq
      %v83 = vand.u32 %v82, 127
      %v84 = vadd.s32 %v83, 128
      %v85 = vsub.s32 %v83, %v50
      %v86 = vsub.s32 %v84, %v50
      %v87 = vsub.s32 %v83, %v51
      %v88 = vsub.s32 %v84, %v51
      %v89 = vsub.s32 %v83, %v52
      %v90 = vsub.s32 %v84, %v52
      %v91 = vsub.s32 %v83, %v53
      %v92 = vsub.s32 %v84, %v53
      %v93 = vsub.s32 %v83, %v54
      %v94 = vsub.s32 %v84, %v54
      %v95 = vsub.s32 %v83, %v55
      %v96 = vsub.s32 %v84, %v55
      %v97 = vsub.s32 %v83, %v56
      %v98 = vsub.s32 %v84, %v56
      %v99 = vsub.s32 %v83, %v57
      %v100 = vsub.s32 %v84, %v57
      %v101 = vsub.s32 %v83, %v58
      %v102 = vsub.s32 %v84, %v58
      %v103 = vsub.s32 %v83, %v59
      %v104 = vsub.s32 %v84, %v59
      %v105 = vsub.s32 %v83, %v60
      %v106 = vsub.s32 %v84, %v60
      %v107 = vsub.s32 %v83, %v61
      %v108 = vsub.s32 %v84, %v61
      %v109 = vsub.s32 %v83, %v62
      %v110 = vsub.s32 %v84, %v62
      %v111 = vsub.s32 %v83, %v63
      %v112 = vsub.s32 %v84, %v63
      %v113 = vsub.s32 %v83, %v64
      %v114 = vsub.s32 %v84, %v64
      %v115 = vsub.s32 %v83, %v65
      %v116 = vsub.s32 %v84, %v65
      %v117 = vsub.s32 %v83, %v66
      %v118 = vsub.s32 %v84, %v66
      %v119 = vsub.s32 %v83, %v67
      %v120 = vsub.s32 %v84, %v67
      %v121 = vsub.s32 %v83, %v68
      %v122 = vsub.s32 %v84, %v68
      %v123 = vsub.s32 %v83, %v69
      %v124 = vsub.s32 %v84, %v69
      %v125 = vsub.s32 %v83, %v70
      %v126 = vsub.s32 %v84, %v70
      %v127 = vsub.s32 %v83, %v71
      %v128 = vsub.s32 %v84, %v71
      %v129 = vsub.s32 %v83, %v72
      %v130 = vsub.s32 %v84, %v72
      %v131 = vsub.s32 %v83, %v73
      %v132 = vsub.s32 %v84, %v73
      %v133 = vsub.s32 %v83, %v74
      %v134 = vsub.s32 %v84, %v74
      %v135 = vsub.s32 %v83, %v75
      %v136 = vsub.s32 %v84, %v75
      %v137 = vsub.s32 %v83, %v76
      %v138 = vsub.s32 %v84, %v76
      %v139 = vsub.s32 %v83, %v77
      %v140 = vsub.s32 %v84, %v77
      %v141 = vsub.s32 %v83, %v78
      %v142 = vsub.s32 %v84, %v78
      %v143 = vsub.s32 %v83, %v79
      %v144 = vsub.s32 %v84, %v79
      %v145 = vsub.s32 %v83, %v80
      %v146 = vsub.s32 %v84, %v80
      %v147 = vsub.s32 %v83, %v81
      %v148 = vsub.s32 %v84, %v81
      %v149 = vcvt.s32.f32 %v85
      %v150 = vcvt.s32.f32 %v86
      %v151 = vcvt.s32.f32 %v87
      %v152 = vcvt.s32.f32 %v88
      %v153 = vcvt.s32.f32 %v89
      %v154 = vcvt.s32.f32 %v90
      %v155 = vcvt.s32.f32 %v91
      %v156 = vcvt.s32.f32 %v92
      %v157 = vcvt.s32.f32 %v93
      %v158 = vcvt.s32.f32 %v94
      %v159 = vcvt.s32.f32 %v95
      %v160 = vcvt.s32.f32 %v96
      %v161 = vcvt.s32.f32 %v97
      %v162 = vcvt.s32.f32 %v98
      %v163 = vcvt.s32.f32 %v99
      %v164 = vcvt.s32.f32 %v100
      %v165 = vcvt.s32.f32 %v101
      %v166 = vcvt.s32.f32 %v102
      %v167 = vcvt.s32.f32 %v103
      %v168 = vcvt.s32.f32 %v104
      %v169 = vcvt.s32.f32 %v105
      %v170 = vcvt.s32.f32 %v106
      %v171 = vcvt.s32.f32 %v107
      %v172 = vcvt.s32.f32 %v108
      %v173 = vcvt.s32.f32 %v109
      %v174 = vcvt.s32.f32 %v110
      %v175 = vcvt.s32.f32 %v111
      %v176 = vcvt.s32.f32 %v112
      %v177 = vcvt.s32.f32 %v113
      %v178 = vcvt.s32.f32 %v114
      %v179 = vcvt.s32.f32 %v115
      %v180 = vcvt.s32.f32 %v116
      %v181 = vcvt.s32.f32 %v117
      %v182 = vcvt.s32.f32 %v118
      %v183 = vcvt.s32.f32 %v119
      %v184 = vcvt.s32.f32 %v120
      %v185 = vcvt.s32.f32 %v121
      %v186 = vcvt.s32.f32 %v122
      %v187 = vcvt.s32.f32 %v123
      %v188 = vcvt.s32.f32 %v124
      %v189 = vcvt.s32.f32 %v125
      %v190 = vcvt.s32.f32 %v126
      %v191 = vcvt.s32.f32 %v127
      %v192 = vcvt.s32.f32 %v128
      %v193 = vcvt.s32.f32 %v129
      %v194 = vcvt.s32.f32 %v130
      %v195 = vcvt.s32.f32 %v131
      %v196 = vcvt.s32.f32 %v132
      %v197 = vcvt.s32.f32 %v133
      %v198 = vcvt.s32.f32 %v134
      %v199 = vcvt.s32.f32 %v135
      %v200 = vcvt.s32.f32 %v136
      %v201 = vcvt.s32.f32 %v137
      %v202 = vcvt.s32.f32 %v138
      %v203 = vcvt.s32.f32 %v139
      %v204 = vcvt.s32.f32 %v140
      %v205 = vcvt.s32.f32 %v141
      %v206 = vcvt.s32.f32 %v142
      %v207 = vcvt.s32.f32 %v143
      %v208 = vcvt.s32.f32 %v144
      %v209 = vcvt.s32.f32 %v145
      %v210 = vcvt.s32.f32 %v146
      %v211 = vcvt.s32.f32 %v147
      %v212 = vcvt.s32.f32 %v148
      %vm213 = vcmp.ge.f32.partialorder %v149, 0.0
      %vm214 = vcmp.ge.f32.partialorder %v150, 0.0
      %vm215 = vcmp.ge.f32.partialorder %v151, 0.0
      %vm216 = vcmp.ge.f32.partialorder %v152, 0.0
      %vm217 = vcmp.ge.f32.partialorder %v153, 0.0
      %vm218 = vcmp.ge.f32.partialorder %v154, 0.0
      %vm219 = vcmp.ge.f32.partialorder %v155, 0.0
      %vm220 = vcmp.ge.f32.partialorder %v156, 0.0
      %vm221 = vcmp.ge.f32.partialorder %v157, 0.0
      %vm222 = vcmp.ge.f32.partialorder %v158, 0.0
      %vm223 = vcmp.ge.f32.partialorder %v159, 0.0
      %vm224 = vcmp.ge.f32.partialorder %v160, 0.0
      %vm225 = vcmp.ge.f32.partialorder %v161, 0.0
      %vm226 = vcmp.ge.f32.partialorder %v162, 0.0
      %vm227 = vcmp.ge.f32.partialorder %v163, 0.0
      %vm228 = vcmp.ge.f32.partialorder %v164, 0.0
      %vm229 = vcmp.ge.f32.partialorder %v165, 0.0
      %vm230 = vcmp.ge.f32.partialorder %v166, 0.0
      %vm231 = vcmp.ge.f32.partialorder %v167, 0.0
      %vm232 = vcmp.ge.f32.partialorder %v168, 0.0
      %vm233 = vcmp.ge.f32.partialorder %v169, 0.0
      %vm234 = vcmp.ge.f32.partialorder %v170, 0.0
      %vm235 = vcmp.ge.f32.partialorder %v171, 0.0
      %vm236 = vcmp.ge.f32.partialorder %v172, 0.0
      %vm237 = vcmp.ge.f32.partialorder %v173, 0.0
      %vm238 = vcmp.ge.f32.partialorder %v174, 0.0
      %vm239 = vcmp.ge.f32.partialorder %v175, 0.0
      %vm240 = vcmp.ge.f32.partialorder %v176, 0.0
      %vm241 = vcmp.ge.f32.partialorder %v177, 0.0
      %vm242 = vcmp.ge.f32.partialorder %v178, 0.0
      %vm243 = vcmp.ge.f32.partialorder %v179, 0.0
      %vm244 = vcmp.ge.f32.partialorder %v180, 0.0
      %vm245 = vcmp.ge.f32.partialorder %v181, 0.0
      %vm246 = vcmp.ge.f32.partialorder %v182, 0.0
      %vm247 = vcmp.ge.f32.partialorder %v183, 0.0
      %vm248 = vcmp.ge.f32.partialorder %v184, 0.0
      %vm249 = vcmp.ge.f32.partialorder %v185, 0.0
      %vm250 = vcmp.ge.f32.partialorder %v186, 0.0
      %vm251 = vcmp.ge.f32.partialorder %v187, 0.0
      %vm252 = vcmp.ge.f32.partialorder %v188, 0.0
      %vm253 = vcmp.ge.f32.partialorder %v189, 0.0
      %vm254 = vcmp.ge.f32.partialorder %v190, 0.0
      %vm255 = vcmp.ge.f32.partialorder %v191, 0.0
      %vm256 = vcmp.ge.f32.partialorder %v192, 0.0
      %vm257 = vcmp.ge.f32.partialorder %v193, 0.0
      %vm258 = vcmp.ge.f32.partialorder %v194, 0.0
      %vm259 = vcmp.ge.f32.partialorder %v195, 0.0
      %vm260 = vcmp.ge.f32.partialorder %v196, 0.0
      %vm261 = vcmp.ge.f32.partialorder %v197, 0.0
      %vm262 = vcmp.ge.f32.partialorder %v198, 0.0
      %vm263 = vcmp.ge.f32.partialorder %v199, 0.0
      %vm264 = vcmp.ge.f32.partialorder %v200, 0.0
      %vm265 = vcmp.ge.f32.partialorder %v201, 0.0
      %vm266 = vcmp.ge.f32.partialorder %v202, 0.0
      %vm267 = vcmp.ge.f32.partialorder %v203, 0.0
      %vm268 = vcmp.ge.f32.partialorder %v204, 0.0
      %vm269 = vcmp.ge.f32.partialorder %v205, 0.0
      %vm270 = vcmp.ge.f32.partialorder %v206, 0.0
      %vm271 = vcmp.ge.f32.partialorder %v207, 0.0
      %vm272 = vcmp.ge.f32.partialorder %v208, 0.0
      %vm273 = vcmp.ge.f32.partialorder %v209, 0.0
      %vm274 = vcmp.ge.f32.partialorder %v210, 0.0
      %vm275 = vcmp.ge.f32.partialorder %v211, 0.0
      %vm276 = vcmp.ge.f32.partialorder %v212, 0.0
      %v277 = vmul.f32 %v149, %v48
      %v278 = vmul.f32 %v150, %v48
      %v279 = vmul.f32 %v151, %v48
      %v280 = vmul.f32 %v152, %v48
      %v281 = vmul.f32 %v153, %v48
      %v282 = vmul.f32 %v154, %v48
      %v283 = vmul.f32 %v155, %v48
      %v284 = vmul.f32 %v156, %v48
      %v285 = vmul.f32 %v157, %v48
      %v286 = vmul.f32 %v158, %v48
      %v287 = vmul.f32 %v159, %v48
      %v288 = vmul.f32 %v160, %v48
      %v289 = vmul.f32 %v161, %v48
      %v290 = vmul.f32 %v162, %v48
      %v291 = vmul.f32 %v163, %v48
      %v292 = vmul.f32 %v164, %v48
      %v293 = vmul.f32 %v165, %v48
      %v294 = vmul.f32 %v166, %v48
      %v295 = vmul.f32 %v167, %v48
      %v296 = vmul.f32 %v168, %v48
      %v297 = vmul.f32 %v169, %v48
      %v298 = vmul.f32 %v170, %v48
      %v299 = vmul.f32 %v171, %v48
      %v300 = vmul.f32 %v172, %v48
      %v301 = vmul.f32 %v173, %v48
      %v302 = vmul.f32 %v174, %v48
      %v303 = vmul.f32 %v175, %v48
      %v304 = vmul.f32 %v176, %v48
      %v305 = vmul.f32 %v177, %v48
      %v306 = vmul.f32 %v178, %v48
      %v307 = vmul.f32 %v179, %v48
      %v308 = vmul.f32 %v180, %v48
      %v309 = vmul.f32 %v181, %v48
      %v310 = vmul.f32 %v182, %v48
      %v311 = vmul.f32 %v183, %v48
      %v312 = vmul.f32 %v184, %v48
      %v313 = vmul.f32 %v185, %v48
      %v314 = vmul.f32 %v186, %v48
      %v315 = vmul.f32 %v187, %v48
      %v316 = vmul.f32 %v188, %v48
      %v317 = vmul.f32 %v189, %v48
      %v318 = vmul.f32 %v190, %v48
      %v319 = vmul.f32 %v191, %v48
      %v320 = vmul.f32 %v192, %v48
      %v321 = vmul.f32 %v193, %v48
      %v322 = vmul.f32 %v194, %v48
      %v323 = vmul.f32 %v195, %v48
      %v324 = vmul.f32 %v196, %v48
      %v325 = vmul.f32 %v197, %v48
      %v326 = vmul.f32 %v198, %v48
      %v327 = vmul.f32 %v199, %v48
      %v328 = vmul.f32 %v200, %v48
      %v329 = vmul.f32 %v201, %v48
      %v330 = vmul.f32 %v202, %v48
      %v331 = vmul.f32 %v203, %v48
      %v332 = vmul.f32 %v204, %v48
      %v333 = vmul.f32 %v205, %v48
      %v334 = vmul.f32 %v206, %v48
      %v335 = vmul.f32 %v207, %v48
      %v336 = vmul.f32 %v208, %v48
      %v337 = vmul.f32 %v209, %v48
      %v338 = vmul.f32 %v210, %v48
      %v339 = vmul.f32 %v211, %v48
      %v340 = vmul.f32 %v212, %v48
      %v341 = vmul.f32 %v277, 1.442695
      %v342 = vpow.pop %v341
      %v343 = vmul.f32 %v278, 1.442695
      %v344 = vpow.pop %v343
      %v345 = vmul.f32 %v279, 1.442695
      %v346 = vpow.pop %v345
      %v347 = vmul.f32 %v280, 1.442695
      %v348 = vpow.pop %v347
      %v349 = vmul.f32 %v281, 1.442695
      %v350 = vpow.pop %v349
      %v351 = vmul.f32 %v282, 1.442695
      %v352 = vpow.pop %v351
      %v353 = vmul.f32 %v283, 1.442695
      %v354 = vpow.pop %v353
      %v355 = vmul.f32 %v284, 1.442695
      %v356 = vpow.pop %v355
      %v357 = vmul.f32 %v285, 1.442695
      %v358 = vpow.pop %v357
      %v359 = vmul.f32 %v286, 1.442695
      %v360 = vpow.pop %v359
      %v361 = vmul.f32 %v287, 1.442695
      %v362 = vpow.pop %v361
      %v363 = vmul.f32 %v288, 1.442695
      %v364 = vpow.pop %v363
      %v365 = vmul.f32 %v289, 1.442695
      %v366 = vpow.pop %v365
      %v367 = vmul.f32 %v290, 1.442695
      %v368 = vpow.pop %v367
      %v369 = vmul.f32 %v291, 1.442695
      %v370 = vpow.pop %v369
      %v371 = vmul.f32 %v292, 1.442695
      %v372 = vpow.pop %v371
      %v373 = vmul.f32 %v293, 1.442695
      %v374 = vpow.pop %v373
      %v375 = vmul.f32 %v294, 1.442695
      %v376 = vpow.pop %v375
      %v377 = vmul.f32 %v295, 1.442695
      %v378 = vpow.pop %v377
      %v379 = vmul.f32 %v296, 1.442695
      %v380 = vpow.pop %v379
      %v381 = vmul.f32 %v297, 1.442695
      %v382 = vpow.pop %v381
      %v383 = vmul.f32 %v298, 1.442695
      %v384 = vpow.pop %v383
      %v385 = vmul.f32 %v299, 1.442695
      %v386 = vpow.pop %v385
      %v387 = vmul.f32 %v300, 1.442695
      %v388 = vpow.pop %v387
      %v389 = vmul.f32 %v301, 1.442695
      %v390 = vpow.pop %v389
      %v391 = vmul.f32 %v302, 1.442695
      %v392 = vpow.pop %v391
      %v393 = vmul.f32 %v303, 1.442695
      %v394 = vpow.pop %v393
      %v395 = vmul.f32 %v304, 1.442695
      %v396 = vpow.pop %v395
      %v397 = vmul.f32 %v305, 1.442695
      %v398 = vpow.pop %v397
      %v399 = vmul.f32 %v306, 1.442695
      %v400 = vpow.pop %v399
      %v401 = vmul.f32 %v307, 1.442695
      %v402 = vpow.pop %v401
      %v403 = vmul.f32 %v308, 1.442695
      %v404 = vpow.pop %v403
      %v405 = vmul.f32 %v309, 1.442695
      %v406 = vpow.pop %v405
      %v407 = vmul.f32 %v310, 1.442695
      %v408 = vpow.pop %v407
      %v409 = vmul.f32 %v311, 1.442695
      %v410 = vpow.pop %v409
      %v411 = vmul.f32 %v312, 1.442695
      %v412 = vpow.pop %v411
      %v413 = vmul.f32 %v313, 1.442695
      %v414 = vpow.pop %v413
      %v415 = vmul.f32 %v314, 1.442695
      %v416 = vpow.pop %v415
      %v417 = vmul.f32 %v315, 1.442695
      %v418 = vpow.pop %v417
      %v419 = vmul.f32 %v316, 1.442695
      %v420 = vpow.pop %v419
      %v421 = vmul.f32 %v317, 1.442695
      %v422 = vpow.pop %v421
      %v423 = vmul.f32 %v318, 1.442695
      %v424 = vpow.pop %v423
      %v425 = vmul.f32 %v319, 1.442695
      %v426 = vpow.pop %v425
      %v427 = vmul.f32 %v320, 1.442695
      %v428 = vpow.pop %v427
      %v429 = vmul.f32 %v321, 1.442695
      %v430 = vpow.pop %v429
      %v431 = vmul.f32 %v322, 1.442695
      %v432 = vpow.pop %v431
      %v433 = vmul.f32 %v323, 1.442695
      %v434 = vpow.pop %v433
      %v435 = vmul.f32 %v324, 1.442695
      %v436 = vpow.pop %v435
      %v437 = vmul.f32 %v325, 1.442695
      %v438 = vpow.pop %v437
      %v439 = vmul.f32 %v326, 1.442695
      %v440 = vpow.pop %v439
      %v441 = vmul.f32 %v327, 1.442695
      %v442 = vpow.pop %v441
      %v443 = vmul.f32 %v328, 1.442695
      %v444 = vpow.pop %v443
      %v445 = vmul.f32 %v329, 1.442695
      %v446 = vpow.pop %v445
      %v447 = vmul.f32 %v330, 1.442695
      %v448 = vpow.pop %v447
      %v449 = vmul.f32 %v331, 1.442695
      %v450 = vpow.pop %v449
      %v451 = vmul.f32 %v332, 1.442695
      %v452 = vpow.pop %v451
      %v453 = vmul.f32 %v333, 1.442695
      %v454 = vpow.pop %v453
      %v455 = vmul.f32 %v334, 1.442695
      %v456 = vpow.pop %v455
      %v457 = vmul.f32 %v335, 1.442695
      %v458 = vpow.pop %v457
      %v459 = vmul.f32 %v336, 1.442695
      %v460 = vpow.pop %v459
      %v461 = vmul.f32 %v337, 1.442695
      %v462 = vpow.pop %v461
      %v463 = vmul.f32 %v338, 1.442695
      %v464 = vpow.pop %v463
      %v465 = vmul.f32 %v339, 1.442695
      %v466 = vpow.pop %v465
      %v467 = vmul.f32 %v340, 1.442695
      %v468 = vpow.pop %v467
      %v469 = vsel %vm213, %v342, 0.0
      %v470 = vsel %vm214, %v344, 0.0
      %v471 = vsel %vm215, %v346, 0.0
      %v472 = vsel %vm216, %v348, 0.0
      %v473 = vsel %vm217, %v350, 0.0
      %v474 = vsel %vm218, %v352, 0.0
      %v475 = vsel %vm219, %v354, 0.0
      %v476 = vsel %vm220, %v356, 0.0
      %v477 = vsel %vm221, %v358, 0.0
      %v478 = vsel %vm222, %v360, 0.0
      %v479 = vsel %vm223, %v362, 0.0
      %v480 = vsel %vm224, %v364, 0.0
      %v481 = vsel %vm225, %v366, 0.0
      %v482 = vsel %vm226, %v368, 0.0
      %v483 = vsel %vm227, %v370, 0.0
      %v484 = vsel %vm228, %v372, 0.0
      %v485 = vsel %vm229, %v374, 0.0
      %v486 = vsel %vm230, %v376, 0.0
      %v487 = vsel %vm231, %v378, 0.0
      %v488 = vsel %vm232, %v380, 0.0
      %v489 = vsel %vm233, %v382, 0.0
      %v490 = vsel %vm234, %v384, 0.0
      %v491 = vsel %vm235, %v386, 0.0
      %v492 = vsel %vm236, %v388, 0.0
      %v493 = vsel %vm237, %v390, 0.0
      %v494 = vsel %vm238, %v392, 0.0
      %v495 = vsel %vm239, %v394, 0.0
      %v496 = vsel %vm240, %v396, 0.0
      %v497 = vsel %vm241, %v398, 0.0
      %v498 = vsel %vm242, %v400, 0.0
      %v499 = vsel %vm243, %v402, 0.0
      %v500 = vsel %vm244, %v404, 0.0
      %v501 = vsel %vm245, %v406, 0.0
      %v502 = vsel %vm246, %v408, 0.0
      %v503 = vsel %vm247, %v410, 0.0
      %v504 = vsel %vm248, %v412, 0.0
      %v505 = vsel %vm249, %v414, 0.0
      %v506 = vsel %vm250, %v416, 0.0
      %v507 = vsel %vm251, %v418, 0.0
      %v508 = vsel %vm252, %v420, 0.0
      %v509 = vsel %vm253, %v422, 0.0
      %v510 = vsel %vm254, %v424, 0.0
      %v511 = vsel %vm255, %v426, 0.0
      %v512 = vsel %vm256, %v428, 0.0
      %v513 = vsel %vm257, %v430, 0.0
      %v514 = vsel %vm258, %v432, 0.0
      %v515 = vsel %vm259, %v434, 0.0
      %v516 = vsel %vm260, %v436, 0.0
      %v517 = vsel %vm261, %v438, 0.0
      %v518 = vsel %vm262, %v440, 0.0
      %v519 = vsel %vm263, %v442, 0.0
      %v520 = vsel %vm264, %v444, 0.0
      %v521 = vsel %vm265, %v446, 0.0
      %v522 = vsel %vm266, %v448, 0.0
      %v523 = vsel %vm267, %v450, 0.0
      %v524 = vsel %vm268, %v452, 0.0
      %v525 = vsel %vm269, %v454, 0.0
      %v526 = vsel %vm270, %v456, 0.0
      %v527 = vsel %vm271, %v458, 0.0
      %v528 = vsel %vm272, %v460, 0.0
      %v529 = vsel %vm273, %v462, 0.0
      %v530 = vsel %vm274, %v464, 0.0
      %v531 = vsel %vm275, %v466, 0.0
      %v532 = vsel %vm276, %v468, 0.0
      %533 = vst [vmem:[#allocation2] sm:$0xff] %v469
      %534 = vst [vmem:[#allocation2 + $0x8] sm:$0xff] %v470
      %535 = vst [vmem:[#allocation2 + $0x10] sm:$0xff] %v471
      %536 = vst [vmem:[#allocation2 + $0x18] sm:$0xff] %v472
      %537 = vst [vmem:[#allocation2 + $0x20] sm:$0xff] %v473
      %538 = vst [vmem:[#allocation2 + $0x28] sm:$0xff] %v474
      %539 = vst [vmem:[#allocation2 + $0x30] sm:$0xff] %v475
      %540 = vst [vmem:[#allocation2 + $0x38] sm:$0xff] %v476
      %541 = vst [vmem:[#allocation2 + $0x40] sm:$0xff] %v477
      %542 = vst [vmem:[#allocation2 + $0x48] sm:$0xff] %v478
      %543 = vst [vmem:[#allocation2 + $0x50] sm:$0xff] %v479
      %544 = vst [vmem:[#allocation2 + $0x58] sm:$0xff] %v480
      %545 = vst [vmem:[#allocation2 + $0x60] sm:$0xff] %v481
      %546 = vst [vmem:[#allocation2 + $0x68] sm:$0xff] %v482
      %547 = vst [vmem:[#allocation2 + $0x70] sm:$0xff] %v483
      %548 = vst [vmem:[#allocation2 + $0x78] sm:$0xff] %v484
      %549 = vst [vmem:[#allocation2 + $0x80] sm:$0xff] %v485
      %550 = vst [vmem:[#allocation2 + $0x88] sm:$0xff] %v486
      %551 = vst [vmem:[#allocation2 + $0x90] sm:$0xff] %v487
      %552 = vst [vmem:[#allocation2 + $0x98] sm:$0xff] %v488
      %553 = vst [vmem:[#allocation2 + $0xa0] sm:$0xff] %v489
      %554 = vst [vmem:[#allocation2 + $0xa8] sm:$0xff] %v490
      %555 = vst [vmem:[#allocation2 + $0xb0] sm:$0xff] %v491
      %556 = vst [vmem:[#allocation2 + $0xb8] sm:$0xff] %v492
      %557 = vst [vmem:[#allocation2 + $0xc0] sm:$0xff] %v493
      %558 = vst [vmem:[#allocation2 + $0xc8] sm:$0xff] %v494
      %559 = vst [vmem:[#allocation2 + $0xd0] sm:$0xff] %v495
      %560 = vst [vmem:[#allocation2 + $0xd8] sm:$0xff] %v496
      %561 = vst [vmem:[#allocation2 + $0xe0] sm:$0xff] %v497
      %562 = vst [vmem:[#allocation2 + $0xe8] sm:$0xff] %v498
      %563 = vst [vmem:[#allocation2 + $0xf0] sm:$0xff] %v499
      %564 = vst [vmem:[#allocation2 + $0xf8] sm:$0xff] %v500
      %565 = vst [vmem:[#allocation2 + $0x100] sm:$0xff] %v501
      %566 = vst [vmem:[#allocation2 + $0x108] sm:$0xff] %v502
      %567 = vst [vmem:[#allocation2 + $0x110] sm:$0xff] %v503
      %568 = vst [vmem:[#allocation2 + $0x118] sm:$0xff] %v504
      %569 = vst [vmem:[#allocation2 + $0x120] sm:$0xff] %v505
      %570 = vst [vmem:[#allocation2 + $0x128] sm:$0xff] %v506
      %571 = vst [vmem:[#allocation2 + $0x130] sm:$0xff] %v507
      %572 = vst [vmem:[#allocation2 + $0x138] sm:$0xff] %v508
      %573 = vst [vmem:[#allocation2 + $0x140] sm:$0xff] %v509
      %574 = vst [vmem:[#allocation2 + $0x148] sm:$0xff] %v510
      %575 = vst [vmem:[#allocation2 + $0x150] sm:$0xff] %v511
      %576 = vst [vmem:[#allocation2 + $0x158] sm:$0xff] %v512
      %577 = vst [vmem:[#allocation2 + $0x160] sm:$0xff] %v513
      %578 = vst [vmem:[#allocation2 + $0x168] sm:$0xff] %v514
      %579 = vst [vmem:[#allocation2 + $0x170] sm:$0xff] %v515
      %580 = vst [vmem:[#allocation2 + $0x178] sm:$0xff] %v516
      %581 = vst [vmem:[#allocation2 + $0x180] sm:$0xff] %v517
      %582 = vst [vmem:[#allocation2 + $0x188] sm:$0xff] %v518
      %583 = vst [vmem:[#allocation2 + $0x190] sm:$0xff] %v519
      %584 = vst [vmem:[#allocation2 + $0x198] sm:$0xff] %v520
      %585 = vst [vmem:[#allocation2 + $0x1a0] sm:$0xff] %v521
      %586 = vst [vmem:[#allocation2 + $0x1a8] sm:$0xff] %v522
      %587 = vst [vmem:[#allocation2 + $0x1b0] sm:$0xff] %v523
      %588 = vst [vmem:[#allocation2 + $0x1b8] sm:$0xff] %v524
      %589 = vst [vmem:[#allocation2 + $0x1c0] sm:$0xff] %v525
      %590 = vst [vmem:[#allocation2 + $0x1c8] sm:$0xff] %v526
      %591 = vst [vmem:[#allocation2 + $0x1d0] sm:$0xff] %v527
      %592 = vst [vmem:[#allocation2 + $0x1d8] sm:$0xff] %v528
      %593 = vst [vmem:[#allocation2 + $0x1e0] sm:$0xff] %v529
      %594 = vst [vmem:[#allocation2 + $0x1e8] sm:$0xff] %v530
      %595 = vst [vmem:[#allocation2 + $0x1f0] sm:$0xff] %v531
      %596 = vst [vmem:[#allocation2 + $0x1f8] sm:$0xff] %v532
      %v597 = vcvt.s32.f32 %v83
      %v598 = vcvt.s32.f32 %v84
      %v599 = vadd.f32 %v597, 1.0
      %v600 = vadd.f32 %v598, 1.0
      %v601 = vmul.f32 %v599, %v48
      %v602 = vmul.f32 %v600, %v48
      %v603 = vmul.f32 %v601, 1.442695
      %v604 = vpow.pop %v603
      %v605 = vmul.f32 %v602, 1.442695
      %v606 = vpow.pop %v605
      %v609 = vcombine.low %v604, %v606
      %v611 = vunpack.c.l.s4 1966171168
      %v612 = vunpack.c.0.s8 %v611
      %v613 = vlaneseq
      %v614 = vshrl.u32 %v613, 7
      %v615 = vsub.s32 %v612, %v614
      %v616 = vrot.slane %v609, %v615
      %v618 = vunpack.c.l.s4 1966171168
      %v619 = vunpack.c.0.s8 %v618
      %v620 = vlaneseq
      %v621 = vshrl.u32 %v620, 7
      %v622 = vsub.s32 %v619, %v621
      %v623 = vrot.slane %v616, %v622
      %v625 = vlaneseq
      %vm626 = vcmp.ge.s32.totalorder %v625, 0
      %vm627 = vcmp.lt.s32.totalorder %v625, 256
      %vm628 = vmand %vm626, %vm627
      %629 = vst.msk [vmem:[#allocation3] sm:$0x3] %vm628, %v623
      %630 = vst.msk [vmem:[#allocation4] sm:$0x3] %vm628, 0.0
    $region29: #{tpu_custom_call.1} parent=1 // pred_fallthru
      _
    %v631 = vld [vmem:[#allocation9] sm:$0xff]
    %v632 = vld [vmem:[#allocation9 + $0x8] sm:$0xff]
    %v633 = vmul.f32 %v631, %v631
    %v634 = vmul.f32 %v632, %v632
    %v635 = vstv %s39
    %v636 = vmul.f32 %v635, %v633
    %v637 = vmul.f32 %v635, %v634
    %v638 = vstv %s38
    %v639 = vadd.f32 %v638, %v636
    %v640 = vadd.f32 %v638, %v637
    %v641 = vlaneseq
    %v642 = vshrl.u32 %v641, 7
    %v643 = vlaneseq
    %v644 = vand.u32 %v643, 127
    %v645 = vadd.s32 %v644, 128
    %vm646 = vcmp.eq.s32.totalorder %v642, 0
    %vm647 = vcmp.eq.s32.totalorder %v644, 0
    %vm648 = vcmp.eq.s32.totalorder %v645, 0
    %vm649 = vmand %vm646, %vm647
    %vm650 = vmand %vm646, %vm648
    %s651 = scalar_select %p41, 1, 0
    %v652 = vstv %s651
    %vm653 = vcmp.eq.s32.totalorder %v652, 1
    %vm654 = vmand %vm653, %vm649
    %vm655 = vmand %vm653, %vm650
    %v656 = vstv %s37
    %v657 = vsel %vm654, %v656, %v639
    %v658 = vsel %vm655, %v656, %v640
    %v659 = vld [vmem:[#allocation2] sm:$0xff]
    %v660 = vld [vmem:[#allocation2 + $0x8] sm:$0xff]
    %v661 = vld [vmem:[#allocation2 + $0x10] sm:$0xff]
    %v662 = vld [vmem:[#allocation2 + $0x18] sm:$0xff]
    %v663 = vld [vmem:[#allocation2 + $0x20] sm:$0xff]
    %v664 = vld [vmem:[#allocation2 + $0x28] sm:$0xff]
    %v665 = vld [vmem:[#allocation2 + $0x30] sm:$0xff]
    %v666 = vld [vmem:[#allocation2 + $0x38] sm:$0xff]
    %v667 = vld [vmem:[#allocation2 + $0x40] sm:$0xff]
    %v668 = vld [vmem:[#allocation2 + $0x48] sm:$0xff]
    %v669 = vld [vmem:[#allocation2 + $0x50] sm:$0xff]
    %v670 = vld [vmem:[#allocation2 + $0x58] sm:$0xff]
    %v671 = vld [vmem:[#allocation2 + $0x60] sm:$0xff]
    %v672 = vld [vmem:[#allocation2 + $0x68] sm:$0xff]
    %v673 = vld [vmem:[#allocation2 + $0x70] sm:$0xff]
    %v674 = vld [vmem:[#allocation2 + $0x78] sm:$0xff]
    %v675 = vld [vmem:[#allocation2 + $0x80] sm:$0xff]
    %v676 = vld [vmem:[#allocation2 + $0x88] sm:$0xff]
    %v677 = vld [vmem:[#allocation2 + $0x90] sm:$0xff]
    %v678 = vld [vmem:[#allocation2 + $0x98] sm:$0xff]
    %v679 = vld [vmem:[#allocation2 + $0xa0] sm:$0xff]
    %v680 = vld [vmem:[#allocation2 + $0xa8] sm:$0xff]
    %v681 = vld [vmem:[#allocation2 + $0xb0] sm:$0xff]
    %v682 = vld [vmem:[#allocation2 + $0xb8] sm:$0xff]
    %v683 = vld [vmem:[#allocation2 + $0xc0] sm:$0xff]
    %v684 = vld [vmem:[#allocation2 + $0xc8] sm:$0xff]
    %v685 = vld [vmem:[#allocation2 + $0xd0] sm:$0xff]
    %v686 = vld [vmem:[#allocation2 + $0xd8] sm:$0xff]
    %v687 = vld [vmem:[#allocation2 + $0xe0] sm:$0xff]
    %v688 = vld [vmem:[#allocation2 + $0xe8] sm:$0xff]
    %v689 = vld [vmem:[#allocation2 + $0xf0] sm:$0xff]
    %v690 = vld [vmem:[#allocation2 + $0xf8] sm:$0xff]
    %v691 = vld [vmem:[#allocation2 + $0x100] sm:$0xff]
    %v692 = vld [vmem:[#allocation2 + $0x108] sm:$0xff]
    %v693 = vld [vmem:[#allocation2 + $0x110] sm:$0xff]
    %v694 = vld [vmem:[#allocation2 + $0x118] sm:$0xff]
    %v695 = vld [vmem:[#allocation2 + $0x120] sm:$0xff]
    %v696 = vld [vmem:[#allocation2 + $0x128] sm:$0xff]
    %v697 = vld [vmem:[#allocation2 + $0x130] sm:$0xff]
    %v698 = vld [vmem:[#allocation2 + $0x138] sm:$0xff]
    %v699 = vld [vmem:[#allocation2 + $0x140] sm:$0xff]
    %v700 = vld [vmem:[#allocation2 + $0x148] sm:$0xff]
    %v701 = vld [vmem:[#allocation2 + $0x150] sm:$0xff]
    %v702 = vld [vmem:[#allocation2 + $0x158] sm:$0xff]
    %v703 = vld [vmem:[#allocation2 + $0x160] sm:$0xff]
    %v704 = vld [vmem:[#allocation2 + $0x168] sm:$0xff]
    %v705 = vld [vmem:[#allocation2 + $0x170] sm:$0xff]
    %v706 = vld [vmem:[#allocation2 + $0x178] sm:$0xff]
    %v707 = vld [vmem:[#allocation2 + $0x180] sm:$0xff]
    %v708 = vld [vmem:[#allocation2 + $0x188] sm:$0xff]
    %v709 = vld [vmem:[#allocation2 + $0x190] sm:$0xff]
    %v710 = vld [vmem:[#allocation2 + $0x198] sm:$0xff]
    %v711 = vld [vmem:[#allocation2 + $0x1a0] sm:$0xff]
    %v712 = vld [vmem:[#allocation2 + $0x1a8] sm:$0xff]
    %v713 = vld [vmem:[#allocation2 + $0x1b0] sm:$0xff]
    %v714 = vld [vmem:[#allocation2 + $0x1b8] sm:$0xff]
    %v715 = vld [vmem:[#allocation2 + $0x1c0] sm:$0xff]
    %v716 = vld [vmem:[#allocation2 + $0x1c8] sm:$0xff]
    %v717 = vld [vmem:[#allocation2 + $0x1d0] sm:$0xff]
    %v718 = vld [vmem:[#allocation2 + $0x1d8] sm:$0xff]
    %v719 = vld [vmem:[#allocation2 + $0x1e0] sm:$0xff]
    %v720 = vld [vmem:[#allocation2 + $0x1e8] sm:$0xff]
    %v721 = vld [vmem:[#allocation2 + $0x1f0] sm:$0xff]
    %v722 = vld [vmem:[#allocation2 + $0x1f8] sm:$0xff]
    %v723 = vand.u32 %v660, 4294901760
    %724 = vmatprep.subr.mxu0 %v723
    %v725 = vand.u32 %v659, 4294901760
    %726 = vmatpush1.msra.mxu0 %v725
    %v727 = vand.u32 %v662, 4294901760
    %728 = vmatprep.subr.mxu0 %v727
    %v729 = vand.u32 %v661, 4294901760
    %730 = vmatpush1.msra.mxu0 %v729
    %v731 = vand.u32 %v664, 4294901760
    %732 = vmatprep.subr.mxu0 %v731
    %v733 = vand.u32 %v663, 4294901760
    %734 = vmatpush1.msra.mxu0 %v733
    %v735 = vand.u32 %v666, 4294901760
    %736 = vmatprep.subr.mxu0 %v735
    %v737 = vand.u32 %v665, 4294901760
    %738 = vmatpush1.msra.mxu0 %v737
    %v739 = vand.u32 %v668, 4294901760
    %740 = vmatprep.subr.mxu0 %v739
    %v741 = vand.u32 %v667, 4294901760
    %742 = vmatpush1.msra.mxu0 %v741
    %v743 = vand.u32 %v670, 4294901760
    %744 = vmatprep.subr.mxu0 %v743
    %v745 = vand.u32 %v669, 4294901760
    %746 = vmatpush1.msra.mxu0 %v745
    %v747 = vand.u32 %v672, 4294901760
    %748 = vmatprep.subr.mxu0 %v747
    %v749 = vand.u32 %v671, 4294901760
    %750 = vmatpush1.msra.mxu0 %v749
    %v751 = vand.u32 %v674, 4294901760
    %752 = vmatprep.subr.mxu0 %v751
    %v753 = vand.u32 %v673, 4294901760
    %754 = vmatpush1.msra.mxu0 %v753
    %v755 = vand.u32 %v676, 4294901760
    %756 = vmatprep.subr.mxu0 %v755
    %v757 = vand.u32 %v675, 4294901760
    %758 = vmatpush1.msra.mxu0 %v757
    %v759 = vand.u32 %v678, 4294901760
    %760 = vmatprep.subr.mxu0 %v759
    %v761 = vand.u32 %v677, 4294901760
    %762 = vmatpush1.msra.mxu0 %v761
    %v763 = vand.u32 %v680, 4294901760
    %764 = vmatprep.subr.mxu0 %v763
    %v765 = vand.u32 %v679, 4294901760
    %766 = vmatpush1.msra.mxu0 %v765
    %v767 = vand.u32 %v682, 4294901760
    %768 = vmatprep.subr.mxu0 %v767
    %v769 = vand.u32 %v681, 4294901760
    %770 = vmatpush1.msra.mxu0 %v769
    %v771 = vand.u32 %v684, 4294901760
    %772 = vmatprep.subr.mxu0 %v771
    %v773 = vand.u32 %v683, 4294901760
    %774 = vmatpush1.msra.mxu0 %v773
    %v775 = vand.u32 %v686, 4294901760
    %776 = vmatprep.subr.mxu0 %v775
    %v777 = vand.u32 %v685, 4294901760
    %778 = vmatpush1.msra.mxu0 %v777
    %v779 = vand.u32 %v688, 4294901760
    %780 = vmatprep.subr.mxu0 %v779
    %v781 = vand.u32 %v687, 4294901760
    %782 = vmatpush1.msra.mxu0 %v781
    %v783 = vand.u32 %v690, 4294901760
    %784 = vmatprep.subr.mxu0 %v783
    %v785 = vand.u32 %v689, 4294901760
    %786 = vmatpush1.msra.mxu0 %v785
    %v787 = vand.u32 %v692, 4294901760
    %788 = vmatprep.subr.mxu0 %v787
    %v789 = vand.u32 %v691, 4294901760
    %790 = vmatpush1.msra.mxu0 %v789
    %v791 = vand.u32 %v694, 4294901760
    %792 = vmatprep.subr.mxu0 %v791
    %v793 = vand.u32 %v693, 4294901760
    %794 = vmatpush1.msra.mxu0 %v793
    %v795 = vand.u32 %v696, 4294901760
    %796 = vmatprep.subr.mxu0 %v795
    %v797 = vand.u32 %v695, 4294901760
    %798 = vmatpush1.msra.mxu0 %v797
    %v799 = vand.u32 %v698, 4294901760
    %800 = vmatprep.subr.mxu0 %v799
    %v801 = vand.u32 %v697, 4294901760
    %802 = vmatpush1.msra.mxu0 %v801
    %v803 = vand.u32 %v700, 4294901760
    %804 = vmatprep.subr.mxu0 %v803
    %v805 = vand.u32 %v699, 4294901760
    %806 = vmatpush1.msra.mxu0 %v805
    %v807 = vand.u32 %v702, 4294901760
    %808 = vmatprep.subr.mxu0 %v807
    %v809 = vand.u32 %v701, 4294901760
    %810 = vmatpush1.msra.mxu0 %v809
    %v811 = vand.u32 %v704, 4294901760
    %812 = vmatprep.subr.mxu0 %v811
    %v813 = vand.u32 %v703, 4294901760
    %814 = vmatpush1.msra.mxu0 %v813
    %v815 = vand.u32 %v706, 4294901760
    %816 = vmatprep.subr.mxu0 %v815
    %v817 = vand.u32 %v705, 4294901760
    %818 = vmatpush1.msra.mxu0 %v817
    %v819 = vand.u32 %v708, 4294901760
    %820 = vmatprep.subr.mxu0 %v819
    %v821 = vand.u32 %v707, 4294901760
    %822 = vmatpush1.msra.mxu0 %v821
    %v823 = vand.u32 %v710, 4294901760
    %824 = vmatprep.subr.mxu0 %v823
    %v825 = vand.u32 %v709, 4294901760
    %826 = vmatpush1.msra.mxu0 %v825
    %v827 = vand.u32 %v712, 4294901760
    %828 = vmatprep.subr.mxu0 %v827
    %v829 = vand.u32 %v711, 4294901760
    %830 = vmatpush1.msra.mxu0 %v829
    %v831 = vand.u32 %v714, 4294901760
    %832 = vmatprep.subr.mxu0 %v831
    %v833 = vand.u32 %v713, 4294901760
    %834 = vmatpush1.msra.mxu0 %v833
    %v835 = vand.u32 %v716, 4294901760
    %836 = vmatprep.subr.mxu0 %v835
    %v837 = vand.u32 %v715, 4294901760
    %838 = vmatpush1.msra.mxu0 %v837
    %v839 = vand.u32 %v718, 4294901760
    %840 = vmatprep.subr.mxu0 %v839
    %v841 = vand.u32 %v717, 4294901760
    %842 = vmatpush1.msra.mxu0 %v841
    %v843 = vand.u32 %v720, 4294901760
    %844 = vmatprep.subr.mxu0 %v843
    %v845 = vand.u32 %v719, 4294901760
    %846 = vmatpush1.msra.mxu0 %v845
    %v847 = vand.u32 %v722, 4294901760
    %848 = vmatprep.subr.mxu0 %v847
    %v849 = vand.u32 %v721, 4294901760
    %850 = vmatpush1.msra.mxu0 %v849
    %v851 = vand.u32 %v658, 4294901760
    %v852 = vsub.f32 %v658, %v851
    %v853 = vand.u32 %v852, 4294901760
    %v854 = vsub.f32 %v852, %v853
    %v855 = vand.u32 %v854, 4294901760
    %856 = vmatprep.mubr.f32.mxu0 %v855
    %v857 = vand.u32 %v657, 4294901760
    %v858 = vsub.f32 %v657, %v857
    %v859 = vand.u32 %v858, 4294901760
    %v860 = vsub.f32 %v858, %v859
    %v861 = vand.u32 %v860, 4294901760
    %862 = vmatmul.mubr.f32.gmra.mrb[0].mxu0 %v861
    %v863 = vpop.f32.mrb[0].mxu0
    %v864 = vadd.f32 0.0, %v863
    %v865 = vpop.f32.mrb[0].mxu0
    %v866 = vadd.f32 0.0, %v865
    %867 = vdwg.mxu0
    %v868 = vand.u32 %v660, 4294901760
    %v869 = vsub.f32 %v660, %v868
    %v870 = vand.u32 %v869, 4294901760
    %v871 = vsub.f32 %v869, %v870
    %v872 = vand.u32 %v871, 4294901760
    %873 = vmatprep.subr.mxu0 %v872
    %v874 = vand.u32 %v659, 4294901760
    %v875 = vsub.f32 %v659, %v874
    %v876 = vand.u32 %v875, 4294901760
    %v877 = vsub.f32 %v875, %v876
    %v878 = vand.u32 %v877, 4294901760
    %879 = vmatpush1.msra.mxu0 %v878
    %v880 = vand.u32 %v662, 4294901760
    %v881 = vsub.f32 %v662, %v880
    %v882 = vand.u32 %v881, 4294901760
    %v883 = vsub.f32 %v881, %v882
    %v884 = vand.u32 %v883, 4294901760
    %885 = vmatprep.subr.mxu0 %v884
    %v886 = vand.u32 %v661, 4294901760
    %v887 = vsub.f32 %v661, %v886
    %v888 = vand.u32 %v887, 4294901760
    %v889 = vsub.f32 %v887, %v888
    %v890 = vand.u32 %v889, 4294901760
    %891 = vmatpush1.msra.mxu0 %v890
    %v892 = vand.u32 %v664, 4294901760
    %v893 = vsub.f32 %v664, %v892
    %v894 = vand.u32 %v893, 4294901760
    %v895 = vsub.f32 %v893, %v894
    %v896 = vand.u32 %v895, 4294901760
    %897 = vmatprep.subr.mxu0 %v896
    %v898 = vand.u32 %v663, 4294901760
    %v899 = vsub.f32 %v663, %v898
    %v900 = vand.u32 %v899, 4294901760
    %v901 = vsub.f32 %v899, %v900
    %v902 = vand.u32 %v901, 4294901760
    %903 = vmatpush1.msra.mxu0 %v902
    %v904 = vand.u32 %v666, 4294901760
    %v905 = vsub.f32 %v666, %v904
    %v906 = vand.u32 %v905, 4294901760
    %v907 = vsub.f32 %v905, %v906
    %v908 = vand.u32 %v907, 4294901760
    %909 = vmatprep.subr.mxu0 %v908
    %v910 = vand.u32 %v665, 4294901760
    %v911 = vsub.f32 %v665, %v910
    %v912 = vand.u32 %v911, 4294901760
    %v913 = vsub.f32 %v911, %v912
    %v914 = vand.u32 %v913, 4294901760
    %915 = vmatpush1.msra.mxu0 %v914
    %v916 = vand.u32 %v668, 4294901760
    %v917 = vsub.f32 %v668, %v916
    %v918 = vand.u32 %v917, 4294901760
    %v919 = vsub.f32 %v917, %v918
    %v920 = vand.u32 %v919, 4294901760
    %921 = vmatprep.subr.mxu0 %v920
    %v922 = vand.u32 %v667, 4294901760
    %v923 = vsub.f32 %v667, %v922
    %v924 = vand.u32 %v923, 4294901760
    %v925 = vsub.f32 %v923, %v924
    %v926 = vand.u32 %v925, 4294901760
    %927 = vmatpush1.msra.mxu0 %v926
    %v928 = vand.u32 %v670, 4294901760
    %v929 = vsub.f32 %v670, %v928
    %v930 = vand.u32 %v929, 4294901760
    %v931 = vsub.f32 %v929, %v930
    %v932 = vand.u32 %v931, 4294901760
    %933 = vmatprep.subr.mxu0 %v932
    %v934 = vand.u32 %v669, 4294901760
    %v935 = vsub.f32 %v669, %v934
    %v936 = vand.u32 %v935, 4294901760
    %v937 = vsub.f32 %v935, %v936
    %v938 = vand.u32 %v937, 4294901760
    %939 = vmatpush1.msra.mxu0 %v938
    %v940 = vand.u32 %v672, 4294901760
    %v941 = vsub.f32 %v672, %v940
    %v942 = vand.u32 %v941, 4294901760
    %v943 = vsub.f32 %v941, %v942
    %v944 = vand.u32 %v943, 4294901760
    %945 = vmatprep.subr.mxu0 %v944
    %v946 = vand.u32 %v671, 4294901760
    %v947 = vsub.f32 %v671, %v946
    %v948 = vand.u32 %v947, 4294901760
    %v949 = vsub.f32 %v947, %v948
    %v950 = vand.u32 %v949, 4294901760
    %951 = vmatpush1.msra.mxu0 %v950
    %v952 = vand.u32 %v674, 4294901760
    %v953 = vsub.f32 %v674, %v952
    %v954 = vand.u32 %v953, 4294901760
    %v955 = vsub.f32 %v953, %v954
    %v956 = vand.u32 %v955, 4294901760
    %957 = vmatprep.subr.mxu0 %v956
    %v958 = vand.u32 %v673, 4294901760
    %v959 = vsub.f32 %v673, %v958
    %v960 = vand.u32 %v959, 4294901760
    %v961 = vsub.f32 %v959, %v960
    %v962 = vand.u32 %v961, 4294901760
    %963 = vmatpush1.msra.mxu0 %v962
    %v964 = vand.u32 %v676, 4294901760
    %v965 = vsub.f32 %v676, %v964
    %v966 = vand.u32 %v965, 4294901760
    %v967 = vsub.f32 %v965, %v966
    %v968 = vand.u32 %v967, 4294901760
    %969 = vmatprep.subr.mxu0 %v968
    %v970 = vand.u32 %v675, 4294901760
    %v971 = vsub.f32 %v675, %v970
    %v972 = vand.u32 %v971, 4294901760
    %v973 = vsub.f32 %v971, %v972
    %v974 = vand.u32 %v973, 4294901760
    %975 = vmatpush1.msra.mxu0 %v974
    %v976 = vand.u32 %v678, 4294901760
    %v977 = vsub.f32 %v678, %v976
    %v978 = vand.u32 %v977, 4294901760
    %v979 = vsub.f32 %v977, %v978
    %v980 = vand.u32 %v979, 4294901760
    %981 = vmatprep.subr.mxu0 %v980
    %v982 = vand.u32 %v677, 4294901760
    %v983 = vsub.f32 %v677, %v982
    %v984 = vand.u32 %v983, 4294901760
    %v985 = vsub.f32 %v983, %v984
    %v986 = vand.u32 %v985, 4294901760
    %987 = vmatpush1.msra.mxu0 %v986
    %v988 = vand.u32 %v680, 4294901760
    %v989 = vsub.f32 %v680, %v988
    %v990 = vand.u32 %v989, 4294901760
    %v991 = vsub.f32 %v989, %v990
    %v992 = vand.u32 %v991, 4294901760
    %993 = vmatprep.subr.mxu0 %v992
    %v994 = vand.u32 %v679, 4294901760
    %v995 = vsub.f32 %v679, %v994
    %v996 = vand.u32 %v995, 4294901760
    %v997 = vsub.f32 %v995, %v996
    %v998 = vand.u32 %v997, 4294901760
    %999 = vmatpush1.msra.mxu0 %v998
    %v1000 = vand.u32 %v682, 4294901760
    %v1001 = vsub.f32 %v682, %v1000
    %v1002 = vand.u32 %v1001, 4294901760
    %v1003 = vsub.f32 %v1001, %v1002
    %v1004 = vand.u32 %v1003, 4294901760
    %1005 = vmatprep.subr.mxu0 %v1004
    %v1006 = vand.u32 %v681, 4294901760
    %v1007 = vsub.f32 %v681, %v1006
    %v1008 = vand.u32 %v1007, 4294901760
    %v1009 = vsub.f32 %v1007, %v1008
    %v1010 = vand.u32 %v1009, 4294901760
    %1011 = vmatpush1.msra.mxu0 %v1010
    %v1012 = vand.u32 %v684, 4294901760
    %v1013 = vsub.f32 %v684, %v1012
    %v1014 = vand.u32 %v1013, 4294901760
    %v1015 = vsub.f32 %v1013, %v1014
    %v1016 = vand.u32 %v1015, 4294901760
    %1017 = vmatprep.subr.mxu0 %v1016
    %v1018 = vand.u32 %v683, 4294901760
    %v1019 = vsub.f32 %v683, %v1018
    %v1020 = vand.u32 %v1019, 4294901760
    %v1021 = vsub.f32 %v1019, %v1020
    %v1022 = vand.u32 %v1021, 4294901760
    %1023 = vmatpush1.msra.mxu0 %v1022
    %v1024 = vand.u32 %v686, 4294901760
    %v1025 = vsub.f32 %v686, %v1024
    %v1026 = vand.u32 %v1025, 4294901760
    %v1027 = vsub.f32 %v1025, %v1026
    %v1028 = vand.u32 %v1027, 4294901760
    %1029 = vmatprep.subr.mxu0 %v1028
    %v1030 = vand.u32 %v685, 4294901760
    %v1031 = vsub.f32 %v685, %v1030
    %v1032 = vand.u32 %v1031, 4294901760
    %v1033 = vsub.f32 %v1031, %v1032
    %v1034 = vand.u32 %v1033, 4294901760
    %1035 = vmatpush1.msra.mxu0 %v1034
    %v1036 = vand.u32 %v688, 4294901760
    %v1037 = vsub.f32 %v688, %v1036
    %v1038 = vand.u32 %v1037, 4294901760
    %v1039 = vsub.f32 %v1037, %v1038
    %v1040 = vand.u32 %v1039, 4294901760
    %1041 = vmatprep.subr.mxu0 %v1040
    %v1042 = vand.u32 %v687, 4294901760
    %v1043 = vsub.f32 %v687, %v1042
    %v1044 = vand.u32 %v1043, 4294901760
    %v1045 = vsub.f32 %v1043, %v1044
    %v1046 = vand.u32 %v1045, 4294901760
    %1047 = vmatpush1.msra.mxu0 %v1046
    %v1048 = vand.u32 %v690, 4294901760
    %v1049 = vsub.f32 %v690, %v1048
    %v1050 = vand.u32 %v1049, 4294901760
    %v1051 = vsub.f32 %v1049, %v1050
    %v1052 = vand.u32 %v1051, 4294901760
    %1053 = vmatprep.subr.mxu0 %v1052
    %v1054 = vand.u32 %v689, 4294901760
    %v1055 = vsub.f32 %v689, %v1054
    %v1056 = vand.u32 %v1055, 4294901760
    %v1057 = vsub.f32 %v1055, %v1056
    %v1058 = vand.u32 %v1057, 4294901760
    %1059 = vmatpush1.msra.mxu0 %v1058
    %v1060 = vand.u32 %v692, 4294901760
    %v1061 = vsub.f32 %v692, %v1060
    %v1062 = vand.u32 %v1061, 4294901760
    %v1063 = vsub.f32 %v1061, %v1062
    %v1064 = vand.u32 %v1063, 4294901760
    %1065 = vmatprep.subr.mxu0 %v1064
    %v1066 = vand.u32 %v691, 4294901760
    %v1067 = vsub.f32 %v691, %v1066
    %v1068 = vand.u32 %v1067, 4294901760
    %v1069 = vsub.f32 %v1067, %v1068
    %v1070 = vand.u32 %v1069, 4294901760
    %1071 = vmatpush1.msra.mxu0 %v1070
    %v1072 = vand.u32 %v694, 4294901760
    %v1073 = vsub.f32 %v694, %v1072
    %v1074 = vand.u32 %v1073, 4294901760
    %v1075 = vsub.f32 %v1073, %v1074
    %v1076 = vand.u32 %v1075, 4294901760
    %1077 = vmatprep.subr.mxu0 %v1076
    %v1078 = vand.u32 %v693, 4294901760
    %v1079 = vsub.f32 %v693, %v1078
    %v1080 = vand.u32 %v1079, 4294901760
    %v1081 = vsub.f32 %v1079, %v1080
    %v1082 = vand.u32 %v1081, 4294901760
    %1083 = vmatpush1.msra.mxu0 %v1082
    %v1084 = vand.u32 %v696, 4294901760
    %v1085 = vsub.f32 %v696, %v1084
    %v1086 = vand.u32 %v1085, 4294901760
    %v1087 = vsub.f32 %v1085, %v1086
    %v1088 = vand.u32 %v1087, 4294901760
    %1089 = vmatprep.subr.mxu0 %v1088
    %v1090 = vand.u32 %v695, 4294901760
    %v1091 = vsub.f32 %v695, %v1090
    %v1092 = vand.u32 %v1091, 4294901760
    %v1093 = vsub.f32 %v1091, %v1092
    %v1094 = vand.u32 %v1093, 4294901760
    %1095 = vmatpush1.msra.mxu0 %v1094
    %v1096 = vand.u32 %v698, 4294901760
    %v1097 = vsub.f32 %v698, %v1096
    %v1098 = vand.u32 %v1097, 4294901760
    %v1099 = vsub.f32 %v1097, %v1098
    %v1100 = vand.u32 %v1099, 4294901760
    %1101 = vmatprep.subr.mxu0 %v1100
    %v1102 = vand.u32 %v697, 4294901760
    %v1103 = vsub.f32 %v697, %v1102
    %v1104 = vand.u32 %v1103, 4294901760
    %v1105 = vsub.f32 %v1103, %v1104
    %v1106 = vand.u32 %v1105, 4294901760
    %1107 = vmatpush1.msra.mxu0 %v1106
    %v1108 = vand.u32 %v700, 4294901760
    %v1109 = vsub.f32 %v700, %v1108
    %v1110 = vand.u32 %v1109, 4294901760
    %v1111 = vsub.f32 %v1109, %v1110
    %v1112 = vand.u32 %v1111, 4294901760
    %1113 = vmatprep.subr.mxu0 %v1112
    %v1114 = vand.u32 %v699, 4294901760
    %v1115 = vsub.f32 %v699, %v1114
    %v1116 = vand.u32 %v1115, 4294901760
    %v1117 = vsub.f32 %v1115, %v1116
    %v1118 = vand.u32 %v1117, 4294901760
    %1119 = vmatpush1.msra.mxu0 %v1118
    %v1120 = vand.u32 %v702, 4294901760
    %v1121 = vsub.f32 %v702, %v1120
    %v1122 = vand.u32 %v1121, 4294901760
    %v1123 = vsub.f32 %v1121, %v1122
    %v1124 = vand.u32 %v1123, 4294901760
    %1125 = vmatprep.subr.mxu0 %v1124
    %v1126 = vand.u32 %v701, 4294901760
    %v1127 = vsub.f32 %v701, %v1126
    %v1128 = vand.u32 %v1127, 4294901760
    %v1129 = vsub.f32 %v1127, %v1128
    %v1130 = vand.u32 %v1129, 4294901760
    %1131 = vmatpush1.msra.mxu0 %v1130
    %v1132 = vand.u32 %v704, 4294901760
    %v1133 = vsub.f32 %v704, %v1132
    %v1134 = vand.u32 %v1133, 4294901760
    %v1135 = vsub.f32 %v1133, %v1134
    %v1136 = vand.u32 %v1135, 4294901760
    %1137 = vmatprep.subr.mxu0 %v1136
    %v1138 = vand.u32 %v703, 4294901760
    %v1139 = vsub.f32 %v703, %v1138
    %v1140 = vand.u32 %v1139, 4294901760
    %v1141 = vsub.f32 %v1139, %v1140
    %v1142 = vand.u32 %v1141, 4294901760
    %1143 = vmatpush1.msra.mxu0 %v1142
    %v1144 = vand.u32 %v706, 4294901760
    %v1145 = vsub.f32 %v706, %v1144
    %v1146 = vand.u32 %v1145, 4294901760
    %v1147 = vsub.f32 %v1145, %v1146
    %v1148 = vand.u32 %v1147, 4294901760
    %1149 = vmatprep.subr.mxu0 %v1148
    %v1150 = vand.u32 %v705, 4294901760
    %v1151 = vsub.f32 %v705, %v1150
    %v1152 = vand.u32 %v1151, 4294901760
    %v1153 = vsub.f32 %v1151, %v1152
    %v1154 = vand.u32 %v1153, 4294901760
    %1155 = vmatpush1.msra.mxu0 %v1154
    %v1156 = vand.u32 %v708, 4294901760
    %v1157 = vsub.f32 %v708, %v1156
    %v1158 = vand.u32 %v1157, 4294901760
    %v1159 = vsub.f32 %v1157, %v1158
    %v1160 = vand.u32 %v1159, 4294901760
    %1161 = vmatprep.subr.mxu0 %v1160
    %v1162 = vand.u32 %v707, 4294901760
    %v1163 = vsub.f32 %v707, %v1162
    %v1164 = vand.u32 %v1163, 4294901760
    %v1165 = vsub.f32 %v1163, %v1164
    %v1166 = vand.u32 %v1165, 4294901760
    %1167 = vmatpush1.msra.mxu0 %v1166
    %v1168 = vand.u32 %v710, 4294901760
    %v1169 = vsub.f32 %v710, %v1168
    %v1170 = vand.u32 %v1169, 4294901760
    %v1171 = vsub.f32 %v1169, %v1170
    %v1172 = vand.u32 %v1171, 4294901760
    %1173 = vmatprep.subr.mxu0 %v1172
    %v1174 = vand.u32 %v709, 4294901760
    %v1175 = vsub.f32 %v709, %v1174
    %v1176 = vand.u32 %v1175, 4294901760
    %v1177 = vsub.f32 %v1175, %v1176
    %v1178 = vand.u32 %v1177, 4294901760
    %1179 = vmatpush1.msra.mxu0 %v1178
    %v1180 = vand.u32 %v712, 4294901760
    %v1181 = vsub.f32 %v712, %v1180
    %v1182 = vand.u32 %v1181, 4294901760
    %v1183 = vsub.f32 %v1181, %v1182
    %v1184 = vand.u32 %v1183, 4294901760
    %1185 = vmatprep.subr.mxu0 %v1184
    %v1186 = vand.u32 %v711, 4294901760
    %v1187 = vsub.f32 %v711, %v1186
    %v1188 = vand.u32 %v1187, 4294901760
    %v1189 = vsub.f32 %v1187, %v1188
    %v1190 = vand.u32 %v1189, 4294901760
    %1191 = vmatpush1.msra.mxu0 %v1190
    %v1192 = vand.u32 %v714, 4294901760
    %v1193 = vsub.f32 %v714, %v1192
    %v1194 = vand.u32 %v1193, 4294901760
    %v1195 = vsub.f32 %v1193, %v1194
    %v1196 = vand.u32 %v1195, 4294901760
    %1197 = vmatprep.subr.mxu0 %v1196
    %v1198 = vand.u32 %v713, 4294901760
    %v1199 = vsub.f32 %v713, %v1198
    %v1200 = vand.u32 %v1199, 4294901760
    %v1201 = vsub.f32 %v1199, %v1200
    %v1202 = vand.u32 %v1201, 4294901760
    %1203 = vmatpush1.msra.mxu0 %v1202
    %v1204 = vand.u32 %v716, 4294901760
    %v1205 = vsub.f32 %v716, %v1204
    %v1206 = vand.u32 %v1205, 4294901760
    %v1207 = vsub.f32 %v1205, %v1206
    %v1208 = vand.u32 %v1207, 4294901760
    %1209 = vmatprep.subr.mxu0 %v1208
    %v1210 = vand.u32 %v715, 4294901760
    %v1211 = vsub.f32 %v715, %v1210
    %v1212 = vand.u32 %v1211, 4294901760
    %v1213 = vsub.f32 %v1211, %v1212
    %v1214 = vand.u32 %v1213, 4294901760
    %1215 = vmatpush1.msra.mxu0 %v1214
    %v1216 = vand.u32 %v718, 4294901760
    %v1217 = vsub.f32 %v718, %v1216
    %v1218 = vand.u32 %v1217, 4294901760
    %v1219 = vsub.f32 %v1217, %v1218
    %v1220 = vand.u32 %v1219, 4294901760
    %1221 = vmatprep.subr.mxu0 %v1220
    %v1222 = vand.u32 %v717, 4294901760
    %v1223 = vsub.f32 %v717, %v1222
    %v1224 = vand.u32 %v1223, 4294901760
    %v1225 = vsub.f32 %v1223, %v1224
    %v1226 = vand.u32 %v1225, 4294901760
    %1227 = vmatpush1.msra.mxu0 %v1226
    %v1228 = vand.u32 %v720, 4294901760
    %v1229 = vsub.f32 %v720, %v1228
    %v1230 = vand.u32 %v1229, 4294901760
    %v1231 = vsub.f32 %v1229, %v1230
    %v1232 = vand.u32 %v1231, 4294901760
    %1233 = vmatprep.subr.mxu0 %v1232
    %v1234 = vand.u32 %v719, 4294901760
    %v1235 = vsub.f32 %v719, %v1234
    %v1236 = vand.u32 %v1235, 4294901760
    %v1237 = vsub.f32 %v1235, %v1236
    %v1238 = vand.u32 %v1237, 4294901760
    %1239 = vmatpush1.msra.mxu0 %v1238
    %v1240 = vand.u32 %v722, 4294901760
    %v1241 = vsub.f32 %v722, %v1240
    %v1242 = vand.u32 %v1241, 4294901760
    %v1243 = vsub.f32 %v1241, %v1242
    %v1244 = vand.u32 %v1243, 4294901760
    %1245 = vmatprep.subr.mxu0 %v1244
    %v1246 = vand.u32 %v721, 4294901760
    %v1247 = vsub.f32 %v721, %v1246
    %v1248 = vand.u32 %v1247, 4294901760
    %v1249 = vsub.f32 %v1247, %v1248
    %v1250 = vand.u32 %v1249, 4294901760
    %1251 = vmatpush1.msra.mxu0 %v1250
    %v1252 = vand.u32 %v658, 4294901760
    %1253 = vmatprep.mubr.f32.mxu0 %v1252
    %v1254 = vand.u32 %v657, 4294901760
    %1255 = vmatmul.mubr.f32.gmra.mrb[0].mxu0 %v1254
    %v1256 = vpop.f32.mrb[0].mxu0
    %v1257 = vadd.f32 %v864, %v1256
    %v1258 = vpop.f32.mrb[0].mxu0
    %v1259 = vadd.f32 %v866, %v1258
    %1260 = vdwg.mxu0
    %v1261 = vand.u32 %v660, 4294901760
    %v1262 = vsub.f32 %v660, %v1261
    %1263 = vmatprep.subr.mxu0 %v1262
    %v1264 = vand.u32 %v659, 4294901760
    %v1265 = vsub.f32 %v659, %v1264
    %1266 = vmatpush1.msra.mxu0 %v1265
    %v1267 = vand.u32 %v662, 4294901760
    %v1268 = vsub.f32 %v662, %v1267
    %1269 = vmatprep.subr.mxu0 %v1268
    %v1270 = vand.u32 %v661, 4294901760
    %v1271 = vsub.f32 %v661, %v1270
    %1272 = vmatpush1.msra.mxu0 %v1271
    %v1273 = vand.u32 %v664, 4294901760
    %v1274 = vsub.f32 %v664, %v1273
    %1275 = vmatprep.subr.mxu0 %v1274
    %v1276 = vand.u32 %v663, 4294901760
    %v1277 = vsub.f32 %v663, %v1276
    %1278 = vmatpush1.msra.mxu0 %v1277
    %v1279 = vand.u32 %v666, 4294901760
    %v1280 = vsub.f32 %v666, %v1279
    %1281 = vmatprep.subr.mxu0 %v1280
    %v1282 = vand.u32 %v665, 4294901760
    %v1283 = vsub.f32 %v665, %v1282
    %1284 = vmatpush1.msra.mxu0 %v1283
    %v1285 = vand.u32 %v668, 4294901760
    %v1286 = vsub.f32 %v668, %v1285
    %1287 = vmatprep.subr.mxu0 %v1286
    %v1288 = vand.u32 %v667, 4294901760
    %v1289 = vsub.f32 %v667, %v1288
    %1290 = vmatpush1.msra.mxu0 %v1289
    %v1291 = vand.u32 %v670, 4294901760
    %v1292 = vsub.f32 %v670, %v1291
    %1293 = vmatprep.subr.mxu0 %v1292
    %v1294 = vand.u32 %v669, 4294901760
    %v1295 = vsub.f32 %v669, %v1294
    %1296 = vmatpush1.msra.mxu0 %v1295
    %v1297 = vand.u32 %v672, 4294901760
    %v1298 = vsub.f32 %v672, %v1297
    %1299 = vmatprep.subr.mxu0 %v1298
    %v1300 = vand.u32 %v671, 4294901760
    %v1301 = vsub.f32 %v671, %v1300
    %1302 = vmatpush1.msra.mxu0 %v1301
    %v1303 = vand.u32 %v674, 4294901760
    %v1304 = vsub.f32 %v674, %v1303
    %1305 = vmatprep.subr.mxu0 %v1304
    %v1306 = vand.u32 %v673, 4294901760
    %v1307 = vsub.f32 %v673, %v1306
    %1308 = vmatpush1.msra.mxu0 %v1307
    %v1309 = vand.u32 %v676, 4294901760
    %v1310 = vsub.f32 %v676, %v1309
    %1311 = vmatprep.subr.mxu0 %v1310
    %v1312 = vand.u32 %v675, 4294901760
    %v1313 = vsub.f32 %v675, %v1312
    %1314 = vmatpush1.msra.mxu0 %v1313
    %v1315 = vand.u32 %v678, 4294901760
    %v1316 = vsub.f32 %v678, %v1315
    %1317 = vmatprep.subr.mxu0 %v1316
    %v1318 = vand.u32 %v677, 4294901760
    %v1319 = vsub.f32 %v677, %v1318
    %1320 = vmatpush1.msra.mxu0 %v1319
    %v1321 = vand.u32 %v680, 4294901760
    %v1322 = vsub.f32 %v680, %v1321
    %1323 = vmatprep.subr.mxu0 %v1322
    %v1324 = vand.u32 %v679, 4294901760
    %v1325 = vsub.f32 %v679, %v1324
    %1326 = vmatpush1.msra.mxu0 %v1325
    %v1327 = vand.u32 %v682, 4294901760
    %v1328 = vsub.f32 %v682, %v1327
    %1329 = vmatprep.subr.mxu0 %v1328
    %v1330 = vand.u32 %v681, 4294901760
    %v1331 = vsub.f32 %v681, %v1330
    %1332 = vmatpush1.msra.mxu0 %v1331
    %v1333 = vand.u32 %v684, 4294901760
    %v1334 = vsub.f32 %v684, %v1333
    %1335 = vmatprep.subr.mxu0 %v1334
    %v1336 = vand.u32 %v683, 4294901760
    %v1337 = vsub.f32 %v683, %v1336
    %1338 = vmatpush1.msra.mxu0 %v1337
    %v1339 = vand.u32 %v686, 4294901760
    %v1340 = vsub.f32 %v686, %v1339
    %1341 = vmatprep.subr.mxu0 %v1340
    %v1342 = vand.u32 %v685, 4294901760
    %v1343 = vsub.f32 %v685, %v1342
    %1344 = vmatpush1.msra.mxu0 %v1343
    %v1345 = vand.u32 %v688, 4294901760
    %v1346 = vsub.f32 %v688, %v1345
    %1347 = vmatprep.subr.mxu0 %v1346
    %v1348 = vand.u32 %v687, 4294901760
    %v1349 = vsub.f32 %v687, %v1348
    %1350 = vmatpush1.msra.mxu0 %v1349
    %v1351 = vand.u32 %v690, 4294901760
    %v1352 = vsub.f32 %v690, %v1351
    %1353 = vmatprep.subr.mxu0 %v1352
    %v1354 = vand.u32 %v689, 4294901760
    %v1355 = vsub.f32 %v689, %v1354
    %1356 = vmatpush1.msra.mxu0 %v1355
    %v1357 = vand.u32 %v692, 4294901760
    %v1358 = vsub.f32 %v692, %v1357
    %1359 = vmatprep.subr.mxu0 %v1358
    %v1360 = vand.u32 %v691, 4294901760
    %v1361 = vsub.f32 %v691, %v1360
    %1362 = vmatpush1.msra.mxu0 %v1361
    %v1363 = vand.u32 %v694, 4294901760
    %v1364 = vsub.f32 %v694, %v1363
    %1365 = vmatprep.subr.mxu0 %v1364
    %v1366 = vand.u32 %v693, 4294901760
    %v1367 = vsub.f32 %v693, %v1366
    %1368 = vmatpush1.msra.mxu0 %v1367
    %v1369 = vand.u32 %v696, 4294901760
    %v1370 = vsub.f32 %v696, %v1369
    %1371 = vmatprep.subr.mxu0 %v1370
    %v1372 = vand.u32 %v695, 4294901760
    %v1373 = vsub.f32 %v695, %v1372
    %1374 = vmatpush1.msra.mxu0 %v1373
    %v1375 = vand.u32 %v698, 4294901760
    %v1376 = vsub.f32 %v698, %v1375
    %1377 = vmatprep.subr.mxu0 %v1376
    %v1378 = vand.u32 %v697, 4294901760
    %v1379 = vsub.f32 %v697, %v1378
    %1380 = vmatpush1.msra.mxu0 %v1379
    %v1381 = vand.u32 %v700, 4294901760
    %v1382 = vsub.f32 %v700, %v1381
    %1383 = vmatprep.subr.mxu0 %v1382
    %v1384 = vand.u32 %v699, 4294901760
    %v1385 = vsub.f32 %v699, %v1384
    %1386 = vmatpush1.msra.mxu0 %v1385
    %v1387 = vand.u32 %v702, 4294901760
    %v1388 = vsub.f32 %v702, %v1387
    %1389 = vmatprep.subr.mxu0 %v1388
    %v1390 = vand.u32 %v701, 4294901760
    %v1391 = vsub.f32 %v701, %v1390
    %1392 = vmatpush1.msra.mxu0 %v1391
    %v1393 = vand.u32 %v704, 4294901760
    %v1394 = vsub.f32 %v704, %v1393
    %1395 = vmatprep.subr.mxu0 %v1394
    %v1396 = vand.u32 %v703, 4294901760
    %v1397 = vsub.f32 %v703, %v1396
    %1398 = vmatpush1.msra.mxu0 %v1397
    %v1399 = vand.u32 %v706, 4294901760
    %v1400 = vsub.f32 %v706, %v1399
    %1401 = vmatprep.subr.mxu0 %v1400
    %v1402 = vand.u32 %v705, 4294901760
    %v1403 = vsub.f32 %v705, %v1402
    %1404 = vmatpush1.msra.mxu0 %v1403
    %v1405 = vand.u32 %v708, 4294901760
    %v1406 = vsub.f32 %v708, %v1405
    %1407 = vmatprep.subr.mxu0 %v1406
    %v1408 = vand.u32 %v707, 4294901760
    %v1409 = vsub.f32 %v707, %v1408
    %1410 = vmatpush1.msra.mxu0 %v1409
    %v1411 = vand.u32 %v710, 4294901760
    %v1412 = vsub.f32 %v710, %v1411
    %1413 = vmatprep.subr.mxu0 %v1412
    %v1414 = vand.u32 %v709, 4294901760
    %v1415 = vsub.f32 %v709, %v1414
    %1416 = vmatpush1.msra.mxu0 %v1415
    %v1417 = vand.u32 %v712, 4294901760
    %v1418 = vsub.f32 %v712, %v1417
    %1419 = vmatprep.subr.mxu0 %v1418
    %v1420 = vand.u32 %v711, 4294901760
    %v1421 = vsub.f32 %v711, %v1420
    %1422 = vmatpush1.msra.mxu0 %v1421
    %v1423 = vand.u32 %v714, 4294901760
    %v1424 = vsub.f32 %v714, %v1423
    %1425 = vmatprep.subr.mxu0 %v1424
    %v1426 = vand.u32 %v713, 4294901760
    %v1427 = vsub.f32 %v713, %v1426
    %1428 = vmatpush1.msra.mxu0 %v1427
    %v1429 = vand.u32 %v716, 4294901760
    %v1430 = vsub.f32 %v716, %v1429
    %1431 = vmatprep.subr.mxu0 %v1430
    %v1432 = vand.u32 %v715, 4294901760
    %v1433 = vsub.f32 %v715, %v1432
    %1434 = vmatpush1.msra.mxu0 %v1433
    %v1435 = vand.u32 %v718, 4294901760
    %v1436 = vsub.f32 %v718, %v1435
    %1437 = vmatprep.subr.mxu0 %v1436
    %v1438 = vand.u32 %v717, 4294901760
    %v1439 = vsub.f32 %v717, %v1438
    %1440 = vmatpush1.msra.mxu0 %v1439
    %v1441 = vand.u32 %v720, 4294901760
    %v1442 = vsub.f32 %v720, %v1441
    %1443 = vmatprep.subr.mxu0 %v1442
    %v1444 = vand.u32 %v719, 4294901760
    %v1445 = vsub.f32 %v719, %v1444
    %1446 = vmatpush1.msra.mxu0 %v1445
    %v1447 = vand.u32 %v722, 4294901760
    %v1448 = vsub.f32 %v722, %v1447
    %1449 = vmatprep.subr.mxu0 %v1448
    %v1450 = vand.u32 %v721, 4294901760
    %v1451 = vsub.f32 %v721, %v1450
    %1452 = vmatpush1.msra.mxu0 %v1451
    %v1453 = vand.u32 %v658, 4294901760
    %v1454 = vsub.f32 %v658, %v1453
    %1455 = vmatprep.mubr.f32.mxu0 %v1454
    %v1456 = vand.u32 %v657, 4294901760
    %v1457 = vsub.f32 %v657, %v1456
    %1458 = vmatmul.mubr.f32.gmra.mrb[0].mxu0 %v1457
    %v1459 = vpop.f32.mrb[0].mxu0
    %v1460 = vadd.f32 %v1257, %v1459
    %v1461 = vpop.f32.mrb[0].mxu0
    %v1462 = vadd.f32 %v1259, %v1461
    %1463 = vdwg.mxu0
    %v1464 = vand.u32 %v660, 4294901760
    %1465 = vmatprep.subr.mxu0 %v1464
    %v1466 = vand.u32 %v659, 4294901760
    %1467 = vmatpush1.msra.mxu0 %v1466
    %v1468 = vand.u32 %v662, 4294901760
    %1469 = vmatprep.subr.mxu0 %v1468
    %v1470 = vand.u32 %v661, 4294901760
    %1471 = vmatpush1.msra.mxu0 %v1470
    %v1472 = vand.u32 %v664, 4294901760
    %1473 = vmatprep.subr.mxu0 %v1472
    %v1474 = vand.u32 %v663, 4294901760
    %1475 = vmatpush1.msra.mxu0 %v1474
    %v1476 = vand.u32 %v666, 4294901760
    %1477 = vmatprep.subr.mxu0 %v1476
    %v1478 = vand.u32 %v665, 4294901760
    %1479 = vmatpush1.msra.mxu0 %v1478
    %v1480 = vand.u32 %v668, 4294901760
    %1481 = vmatprep.subr.mxu0 %v1480
    %v1482 = vand.u32 %v667, 4294901760
    %1483 = vmatpush1.msra.mxu0 %v1482
    %v1484 = vand.u32 %v670, 4294901760
    %1485 = vmatprep.subr.mxu0 %v1484
    %v1486 = vand.u32 %v669, 4294901760
    %1487 = vmatpush1.msra.mxu0 %v1486
    %v1488 = vand.u32 %v672, 4294901760
    %1489 = vmatprep.subr.mxu0 %v1488
    %v1490 = vand.u32 %v671, 4294901760
    %1491 = vmatpush1.msra.mxu0 %v1490
    %v1492 = vand.u32 %v674, 4294901760
    %1493 = vmatprep.subr.mxu0 %v1492
    %v1494 = vand.u32 %v673, 4294901760
    %1495 = vmatpush1.msra.mxu0 %v1494
    %v1496 = vand.u32 %v676, 4294901760
    %1497 = vmatprep.subr.mxu0 %v1496
    %v1498 = vand.u32 %v675, 4294901760
    %1499 = vmatpush1.msra.mxu0 %v1498
    %v1500 = vand.u32 %v678, 4294901760
    %1501 = vmatprep.subr.mxu0 %v1500
    %v1502 = vand.u32 %v677, 4294901760
    %1503 = vmatpush1.msra.mxu0 %v1502
    %v1504 = vand.u32 %v680, 4294901760
    %1505 = vmatprep.subr.mxu0 %v1504
    %v1506 = vand.u32 %v679, 4294901760
    %1507 = vmatpush1.msra.mxu0 %v1506
    %v1508 = vand.u32 %v682, 4294901760
    %1509 = vmatprep.subr.mxu0 %v1508
    %v1510 = vand.u32 %v681, 4294901760
    %1511 = vmatpush1.msra.mxu0 %v1510
    %v1512 = vand.u32 %v684, 4294901760
    %1513 = vmatprep.subr.mxu0 %v1512
    %v1514 = vand.u32 %v683, 4294901760
    %1515 = vmatpush1.msra.mxu0 %v1514
    %v1516 = vand.u32 %v686, 4294901760
    %1517 = vmatprep.subr.mxu0 %v1516
    %v1518 = vand.u32 %v685, 4294901760
    %1519 = vmatpush1.msra.mxu0 %v1518
    %v1520 = vand.u32 %v688, 4294901760
    %1521 = vmatprep.subr.mxu0 %v1520
    %v1522 = vand.u32 %v687, 4294901760
    %1523 = vmatpush1.msra.mxu0 %v1522
    %v1524 = vand.u32 %v690, 4294901760
    %1525 = vmatprep.subr.mxu0 %v1524
    %v1526 = vand.u32 %v689, 4294901760
    %1527 = vmatpush1.msra.mxu0 %v1526
    %v1528 = vand.u32 %v692, 4294901760
    %1529 = vmatprep.subr.mxu0 %v1528
    %v1530 = vand.u32 %v691, 4294901760
    %1531 = vmatpush1.msra.mxu0 %v1530
    %v1532 = vand.u32 %v694, 4294901760
    %1533 = vmatprep.subr.mxu0 %v1532
    %v1534 = vand.u32 %v693, 4294901760
    %1535 = vmatpush1.msra.mxu0 %v1534
    %v1536 = vand.u32 %v696, 4294901760
    %1537 = vmatprep.subr.mxu0 %v1536
    %v1538 = vand.u32 %v695, 4294901760
    %1539 = vmatpush1.msra.mxu0 %v1538
    %v1540 = vand.u32 %v698, 4294901760
    %1541 = vmatprep.subr.mxu0 %v1540
    %v1542 = vand.u32 %v697, 4294901760
    %1543 = vmatpush1.msra.mxu0 %v1542
    %v1544 = vand.u32 %v700, 4294901760
    %1545 = vmatprep.subr.mxu0 %v1544
    %v1546 = vand.u32 %v699, 4294901760
    %1547 = vmatpush1.msra.mxu0 %v1546
    %v1548 = vand.u32 %v702, 4294901760
    %1549 = vmatprep.subr.mxu0 %v1548
    %v1550 = vand.u32 %v701, 4294901760
    %1551 = vmatpush1.msra.mxu0 %v1550
    %v1552 = vand.u32 %v704, 4294901760
    %1553 = vmatprep.subr.mxu0 %v1552
    %v1554 = vand.u32 %v703, 4294901760
    %1555 = vmatpush1.msra.mxu0 %v1554
    %v1556 = vand.u32 %v706, 4294901760
    %1557 = vmatprep.subr.mxu0 %v1556
    %v1558 = vand.u32 %v705, 4294901760
    %1559 = vmatpush1.msra.mxu0 %v1558
    %v1560 = vand.u32 %v708, 4294901760
    %1561 = vmatprep.subr.mxu0 %v1560
    %v1562 = vand.u32 %v707, 4294901760
    %1563 = vmatpush1.msra.mxu0 %v1562
    %v1564 = vand.u32 %v710, 4294901760
    %1565 = vmatprep.subr.mxu0 %v1564
    %v1566 = vand.u32 %v709, 4294901760
    %1567 = vmatpush1.msra.mxu0 %v1566
    %v1568 = vand.u32 %v712, 4294901760
    %1569 = vmatprep.subr.mxu0 %v1568
    %v1570 = vand.u32 %v711, 4294901760
    %1571 = vmatpush1.msra.mxu0 %v1570
    %v1572 = vand.u32 %v714, 4294901760
    %1573 = vmatprep.subr.mxu0 %v1572
    %v1574 = vand.u32 %v713, 4294901760
    %1575 = vmatpush1.msra.mxu0 %v1574
    %v1576 = vand.u32 %v716, 4294901760
    %1577 = vmatprep.subr.mxu0 %v1576
    %v1578 = vand.u32 %v715, 4294901760
    %1579 = vmatpush1.msra.mxu0 %v1578
    %v1580 = vand.u32 %v718, 4294901760
    %1581 = vmatprep.subr.mxu0 %v1580
    %v1582 = vand.u32 %v717, 4294901760
    %1583 = vmatpush1.msra.mxu0 %v1582
    %v1584 = vand.u32 %v720, 4294901760
    %1585 = vmatprep.subr.mxu0 %v1584
    %v1586 = vand.u32 %v719, 4294901760
    %1587 = vmatpush1.msra.mxu0 %v1586
    %v1588 = vand.u32 %v722, 4294901760
    %1589 = vmatprep.subr.mxu0 %v1588
    %v1590 = vand.u32 %v721, 4294901760
    %1591 = vmatpush1.msra.mxu0 %v1590
    %v1592 = vand.u32 %v658, 4294901760
    %v1593 = vsub.f32 %v658, %v1592
    %v1594 = vand.u32 %v1593, 4294901760
    %1595 = vmatprep.mubr.f32.mxu0 %v1594
    %v1596 = vand.u32 %v657, 4294901760
    %v1597 = vsub.f32 %v657, %v1596
    %v1598 = vand.u32 %v1597, 4294901760
    %1599 = vmatmul.mubr.f32.gmra.mrb[0].mxu0 %v1598
    %v1600 = vpop.f32.mrb[0].mxu0
    %v1601 = vadd.f32 %v1460, %v1600
    %v1602 = vpop.f32.mrb[0].mxu0
    %v1603 = vadd.f32 %v1462, %v1602
    %1604 = vdwg.mxu0
    %v1605 = vand.u32 %v660, 4294901760
    %v1606 = vsub.f32 %v660, %v1605
    %v1607 = vand.u32 %v1606, 4294901760
    %1608 = vmatprep.subr.mxu0 %v1607
    %v1609 = vand.u32 %v659, 4294901760
    %v1610 = vsub.f32 %v659, %v1609
    %v1611 = vand.u32 %v1610, 4294901760
    %1612 = vmatpush1.msra.mxu0 %v1611
    %v1613 = vand.u32 %v662, 4294901760
    %v1614 = vsub.f32 %v662, %v1613
    %v1615 = vand.u32 %v1614, 4294901760
    %1616 = vmatprep.subr.mxu0 %v1615
    %v1617 = vand.u32 %v661, 4294901760
    %v1618 = vsub.f32 %v661, %v1617
    %v1619 = vand.u32 %v1618, 4294901760
    %1620 = vmatpush1.msra.mxu0 %v1619
    %v1621 = vand.u32 %v664, 4294901760
    %v1622 = vsub.f32 %v664, %v1621
    %v1623 = vand.u32 %v1622, 4294901760
    %1624 = vmatprep.subr.mxu0 %v1623
    %v1625 = vand.u32 %v663, 4294901760
    %v1626 = vsub.f32 %v663, %v1625
    %v1627 = vand.u32 %v1626, 4294901760
    %1628 = vmatpush1.msra.mxu0 %v1627
    %v1629 = vand.u32 %v666, 4294901760
    %v1630 = vsub.f32 %v666, %v1629
    %v1631 = vand.u32 %v1630, 4294901760
    %1632 = vmatprep.subr.mxu0 %v1631
    %v1633 = vand.u32 %v665, 4294901760
    %v1634 = vsub.f32 %v665, %v1633
    %v1635 = vand.u32 %v1634, 4294901760
    %1636 = vmatpush1.msra.mxu0 %v1635
    %v1637 = vand.u32 %v668, 4294901760
    %v1638 = vsub.f32 %v668, %v1637
    %v1639 = vand.u32 %v1638, 4294901760
    %1640 = vmatprep.subr.mxu0 %v1639
    %v1641 = vand.u32 %v667, 4294901760
    %v1642 = vsub.f32 %v667, %v1641
    %v1643 = vand.u32 %v1642, 4294901760
    %1644 = vmatpush1.msra.mxu0 %v1643
    %v1645 = vand.u32 %v670, 4294901760
    %v1646 = vsub.f32 %v670, %v1645
    %v1647 = vand.u32 %v1646, 4294901760
    %1648 = vmatprep.subr.mxu0 %v1647
    %v1649 = vand.u32 %v669, 4294901760
    %v1650 = vsub.f32 %v669, %v1649
    %v1651 = vand.u32 %v1650, 4294901760
    %1652 = vmatpush1.msra.mxu0 %v1651
    %v1653 = vand.u32 %v672, 4294901760
    %v1654 = vsub.f32 %v672, %v1653
    %v1655 = vand.u32 %v1654, 4294901760
    %1656 = vmatprep.subr.mxu0 %v1655
    %v1657 = vand.u32 %v671, 4294901760
    %v1658 = vsub.f32 %v671, %v1657
    %v1659 = vand.u32 %v1658, 4294901760
    %1660 = vmatpush1.msra.mxu0 %v1659
    %v1661 = vand.u32 %v674, 4294901760
    %v1662 = vsub.f32 %v674, %v1661
    %v1663 = vand.u32 %v1662, 4294901760
    %1664 = vmatprep.subr.mxu0 %v1663
    %v1665 = vand.u32 %v673, 4294901760
    %v1666 = vsub.f32 %v673, %v1665
    %v1667 = vand.u32 %v1666, 4294901760
    %1668 = vmatpush1.msra.mxu0 %v1667
    %v1669 = vand.u32 %v676, 4294901760
    %v1670 = vsub.f32 %v676, %v1669
    %v1671 = vand.u32 %v1670, 4294901760
    %1672 = vmatprep.subr.mxu0 %v1671
    %v1673 = vand.u32 %v675, 4294901760
    %v1674 = vsub.f32 %v675, %v1673
    %v1675 = vand.u32 %v1674, 4294901760
    %1676 = vmatpush1.msra.mxu0 %v1675
    %v1677 = vand.u32 %v678, 4294901760
    %v1678 = vsub.f32 %v678, %v1677
    %v1679 = vand.u32 %v1678, 4294901760
    %1680 = vmatprep.subr.mxu0 %v1679
    %v1681 = vand.u32 %v677, 4294901760
    %v1682 = vsub.f32 %v677, %v1681
    %v1683 = vand.u32 %v1682, 4294901760
    %1684 = vmatpush1.msra.mxu0 %v1683
    %v1685 = vand.u32 %v680, 4294901760
    %v1686 = vsub.f32 %v680, %v1685
    %v1687 = vand.u32 %v1686, 4294901760
    %1688 = vmatprep.subr.mxu0 %v1687
    %v1689 = vand.u32 %v679, 4294901760
    %v1690 = vsub.f32 %v679, %v1689
    %v1691 = vand.u32 %v1690, 4294901760
    %1692 = vmatpush1.msra.mxu0 %v1691
    %v1693 = vand.u32 %v682, 4294901760
    %v1694 = vsub.f32 %v682, %v1693
    %v1695 = vand.u32 %v1694, 4294901760
    %1696 = vmatprep.subr.mxu0 %v1695
    %v1697 = vand.u32 %v681, 4294901760
    %v1698 = vsub.f32 %v681, %v1697
    %v1699 = vand.u32 %v1698, 4294901760
    %1700 = vmatpush1.msra.mxu0 %v1699
    %v1701 = vand.u32 %v684, 4294901760
    %v1702 = vsub.f32 %v684, %v1701
    %v1703 = vand.u32 %v1702, 4294901760
    %1704 = vmatprep.subr.mxu0 %v1703
    %v1705 = vand.u32 %v683, 4294901760
    %v1706 = vsub.f32 %v683, %v1705
    %v1707 = vand.u32 %v1706, 4294901760
    %1708 = vmatpush1.msra.mxu0 %v1707
    %v1709 = vand.u32 %v686, 4294901760
    %v1710 = vsub.f32 %v686, %v1709
    %v1711 = vand.u32 %v1710, 4294901760
    %1712 = vmatprep.subr.mxu0 %v1711
    %v1713 = vand.u32 %v685, 4294901760
    %v1714 = vsub.f32 %v685, %v1713
    %v1715 = vand.u32 %v1714, 4294901760
    %1716 = vmatpush1.msra.mxu0 %v1715
    %v1717 = vand.u32 %v688, 4294901760
    %v1718 = vsub.f32 %v688, %v1717
    %v1719 = vand.u32 %v1718, 4294901760
    %1720 = vmatprep.subr.mxu0 %v1719
    %v1721 = vand.u32 %v687, 4294901760
    %v1722 = vsub.f32 %v687, %v1721
    %v1723 = vand.u32 %v1722, 4294901760
    %1724 = vmatpush1.msra.mxu0 %v1723
    %v1725 = vand.u32 %v690, 4294901760
    %v1726 = vsub.f32 %v690, %v1725
    %v1727 = vand.u32 %v1726, 4294901760
    %1728 = vmatprep.subr.mxu0 %v1727
    %v1729 = vand.u32 %v689, 4294901760
    %v1730 = vsub.f32 %v689, %v1729
    %v1731 = vand.u32 %v1730, 4294901760
    %1732 = vmatpush1.msra.mxu0 %v1731
    %v1733 = vand.u32 %v692, 4294901760
    %v1734 = vsub.f32 %v692, %v1733
    %v1735 = vand.u32 %v1734, 4294901760
    %1736 = vmatprep.subr.mxu0 %v1735
    %v1737 = vand.u32 %v691, 4294901760
    %v1738 = vsub.f32 %v691, %v1737
    %v1739 = vand.u32 %v1738, 4294901760
    %1740 = vmatpush1.msra.mxu0 %v1739
    %v1741 = vand.u32 %v694, 4294901760
    %v1742 = vsub.f32 %v694, %v1741
    %v1743 = vand.u32 %v1742, 4294901760
    %1744 = vmatprep.subr.mxu0 %v1743
    %v1745 = vand.u32 %v693, 4294901760
    %v1746 = vsub.f32 %v693, %v1745
    %v1747 = vand.u32 %v1746, 4294901760
    %1748 = vmatpush1.msra.mxu0 %v1747
    %v1749 = vand.u32 %v696, 4294901760
    %v1750 = vsub.f32 %v696, %v1749
    %v1751 = vand.u32 %v1750, 4294901760
    %1752 = vmatprep.subr.mxu0 %v1751
    %v1753 = vand.u32 %v695, 4294901760
    %v1754 = vsub.f32 %v695, %v1753
    %v1755 = vand.u32 %v1754, 4294901760
    %1756 = vmatpush1.msra.mxu0 %v1755
    %v1757 = vand.u32 %v698, 4294901760
    %v1758 = vsub.f32 %v698, %v1757
    %v1759 = vand.u32 %v1758, 4294901760
    %1760 = vmatprep.subr.mxu0 %v1759
    %v1761 = vand.u32 %v697, 4294901760
    %v1762 = vsub.f32 %v697, %v1761
    %v1763 = vand.u32 %v1762, 4294901760
    %1764 = vmatpush1.msra.mxu0 %v1763
    %v1765 = vand.u32 %v700, 4294901760
    %v1766 = vsub.f32 %v700, %v1765
    %v1767 = vand.u32 %v1766, 4294901760
    %1768 = vmatprep.subr.mxu0 %v1767
    %v1769 = vand.u32 %v699, 4294901760
    %v1770 = vsub.f32 %v699, %v1769
    %v1771 = vand.u32 %v1770, 4294901760
    %1772 = vmatpush1.msra.mxu0 %v1771
    %v1773 = vand.u32 %v702, 4294901760
    %v1774 = vsub.f32 %v702, %v1773
    %v1775 = vand.u32 %v1774, 4294901760
    %1776 = vmatprep.subr.mxu0 %v1775
    %v1777 = vand.u32 %v701, 4294901760
    %v1778 = vsub.f32 %v701, %v1777
    %v1779 = vand.u32 %v1778, 4294901760
    %1780 = vmatpush1.msra.mxu0 %v1779
    %v1781 = vand.u32 %v704, 4294901760
    %v1782 = vsub.f32 %v704, %v1781
    %v1783 = vand.u32 %v1782, 4294901760
    %1784 = vmatprep.subr.mxu0 %v1783
    %v1785 = vand.u32 %v703, 4294901760
    %v1786 = vsub.f32 %v703, %v1785
    %v1787 = vand.u32 %v1786, 4294901760
    %1788 = vmatpush1.msra.mxu0 %v1787
    %v1789 = vand.u32 %v706, 4294901760
    %v1790 = vsub.f32 %v706, %v1789
    %v1791 = vand.u32 %v1790, 4294901760
    %1792 = vmatprep.subr.mxu0 %v1791
    %v1793 = vand.u32 %v705, 4294901760
    %v1794 = vsub.f32 %v705, %v1793
    %v1795 = vand.u32 %v1794, 4294901760
    %1796 = vmatpush1.msra.mxu0 %v1795
    %v1797 = vand.u32 %v708, 4294901760
    %v1798 = vsub.f32 %v708, %v1797
    %v1799 = vand.u32 %v1798, 4294901760
    %1800 = vmatprep.subr.mxu0 %v1799
    %v1801 = vand.u32 %v707, 4294901760
    %v1802 = vsub.f32 %v707, %v1801
    %v1803 = vand.u32 %v1802, 4294901760
    %1804 = vmatpush1.msra.mxu0 %v1803
    %v1805 = vand.u32 %v710, 4294901760
    %v1806 = vsub.f32 %v710, %v1805
    %v1807 = vand.u32 %v1806, 4294901760
    %1808 = vmatprep.subr.mxu0 %v1807
    %v1809 = vand.u32 %v709, 4294901760
    %v1810 = vsub.f32 %v709, %v1809
    %v1811 = vand.u32 %v1810, 4294901760
    %1812 = vmatpush1.msra.mxu0 %v1811
    %v1813 = vand.u32 %v712, 4294901760
    %v1814 = vsub.f32 %v712, %v1813
    %v1815 = vand.u32 %v1814, 4294901760
    %1816 = vmatprep.subr.mxu0 %v1815
    %v1817 = vand.u32 %v711, 4294901760
    %v1818 = vsub.f32 %v711, %v1817
    %v1819 = vand.u32 %v1818, 4294901760
    %1820 = vmatpush1.msra.mxu0 %v1819
    %v1821 = vand.u32 %v714, 4294901760
    %v1822 = vsub.f32 %v714, %v1821
    %v1823 = vand.u32 %v1822, 4294901760
    %1824 = vmatprep.subr.mxu0 %v1823
    %v1825 = vand.u32 %v713, 4294901760
    %v1826 = vsub.f32 %v713, %v1825
    %v1827 = vand.u32 %v1826, 4294901760
    %1828 = vmatpush1.msra.mxu0 %v1827
    %v1829 = vand.u32 %v716, 4294901760
    %v1830 = vsub.f32 %v716, %v1829
    %v1831 = vand.u32 %v1830, 4294901760
    %1832 = vmatprep.subr.mxu0 %v1831
    %v1833 = vand.u32 %v715, 4294901760
    %v1834 = vsub.f32 %v715, %v1833
    %v1835 = vand.u32 %v1834, 4294901760
    %1836 = vmatpush1.msra.mxu0 %v1835
    %v1837 = vand.u32 %v718, 4294901760
    %v1838 = vsub.f32 %v718, %v1837
    %v1839 = vand.u32 %v1838, 4294901760
    %1840 = vmatprep.subr.mxu0 %v1839
    %v1841 = vand.u32 %v717, 4294901760
    %v1842 = vsub.f32 %v717, %v1841
    %v1843 = vand.u32 %v1842, 4294901760
    %1844 = vmatpush1.msra.mxu0 %v1843
    %v1845 = vand.u32 %v720, 4294901760
    %v1846 = vsub.f32 %v720, %v1845
    %v1847 = vand.u32 %v1846, 4294901760
    %1848 = vmatprep.subr.mxu0 %v1847
    %v1849 = vand.u32 %v719, 4294901760
    %v1850 = vsub.f32 %v719, %v1849
    %v1851 = vand.u32 %v1850, 4294901760
    %1852 = vmatpush1.msra.mxu0 %v1851
    %v1853 = vand.u32 %v722, 4294901760
    %v1854 = vsub.f32 %v722, %v1853
    %v1855 = vand.u32 %v1854, 4294901760
    %1856 = vmatprep.subr.mxu0 %v1855
    %v1857 = vand.u32 %v721, 4294901760
    %v1858 = vsub.f32 %v721, %v1857
    %v1859 = vand.u32 %v1858, 4294901760
    %1860 = vmatpush1.msra.mxu0 %v1859
    %v1861 = vand.u32 %v658, 4294901760
    %1862 = vmatprep.mubr.f32.mxu0 %v1861
    %v1863 = vand.u32 %v657, 4294901760
    %1864 = vmatmul.mubr.f32.gmra.mrb[0].mxu0 %v1863
    %v1865 = vpop.f32.mrb[0].mxu0
    %v1866 = vadd.f32 %v1601, %v1865
    %v1867 = vpop.f32.mrb[0].mxu0
    %v1868 = vadd.f32 %v1603, %v1867
    %1869 = vdwg.mxu0
    %v1870 = vand.u32 %v660, 4294901760
    %1871 = vmatprep.subr.mxu0 %v1870
    %v1872 = vand.u32 %v659, 4294901760
    %1873 = vmatpush1.msra.mxu0 %v1872
    %v1874 = vand.u32 %v662, 4294901760
    %1875 = vmatprep.subr.mxu0 %v1874
    %v1876 = vand.u32 %v661, 4294901760
    %1877 = vmatpush1.msra.mxu0 %v1876
    %v1878 = vand.u32 %v664, 4294901760
    %1879 = vmatprep.subr.mxu0 %v1878
    %v1880 = vand.u32 %v663, 4294901760
    %1881 = vmatpush1.msra.mxu0 %v1880
    %v1882 = vand.u32 %v666, 4294901760
    %1883 = vmatprep.subr.mxu0 %v1882
    %v1884 = vand.u32 %v665, 4294901760
    %1885 = vmatpush1.msra.mxu0 %v1884
    %v1886 = vand.u32 %v668, 4294901760
    %1887 = vmatprep.subr.mxu0 %v1886
    %v1888 = vand.u32 %v667, 4294901760
    %1889 = vmatpush1.msra.mxu0 %v1888
    %v1890 = vand.u32 %v670, 4294901760
    %1891 = vmatprep.subr.mxu0 %v1890
    %v1892 = vand.u32 %v669, 4294901760
    %1893 = vmatpush1.msra.mxu0 %v1892
    %v1894 = vand.u32 %v672, 4294901760
    %1895 = vmatprep.subr.mxu0 %v1894
    %v1896 = vand.u32 %v671, 4294901760
    %1897 = vmatpush1.msra.mxu0 %v1896
    %v1898 = vand.u32 %v674, 4294901760
    %1899 = vmatprep.subr.mxu0 %v1898
    %v1900 = vand.u32 %v673, 4294901760
    %1901 = vmatpush1.msra.mxu0 %v1900
    %v1902 = vand.u32 %v676, 4294901760
    %1903 = vmatprep.subr.mxu0 %v1902
    %v1904 = vand.u32 %v675, 4294901760
    %1905 = vmatpush1.msra.mxu0 %v1904
    %v1906 = vand.u32 %v678, 4294901760
    %1907 = vmatprep.subr.mxu0 %v1906
    %v1908 = vand.u32 %v677, 4294901760
    %1909 = vmatpush1.msra.mxu0 %v1908
    %v1910 = vand.u32 %v680, 4294901760
    %1911 = vmatprep.subr.mxu0 %v1910
    %v1912 = vand.u32 %v679, 4294901760
    %1913 = vmatpush1.msra.mxu0 %v1912
    %v1914 = vand.u32 %v682, 4294901760
    %1915 = vmatprep.subr.mxu0 %v1914
    %v1916 = vand.u32 %v681, 4294901760
    %1917 = vmatpush1.msra.mxu0 %v1916
    %v1918 = vand.u32 %v684, 4294901760
    %1919 = vmatprep.subr.mxu0 %v1918
    %v1920 = vand.u32 %v683, 4294901760
    %1921 = vmatpush1.msra.mxu0 %v1920
    %v1922 = vand.u32 %v686, 4294901760
    %1923 = vmatprep.subr.mxu0 %v1922
    %v1924 = vand.u32 %v685, 4294901760
    %1925 = vmatpush1.msra.mxu0 %v1924
    %v1926 = vand.u32 %v688, 4294901760
    %1927 = vmatprep.subr.mxu0 %v1926
    %v1928 = vand.u32 %v687, 4294901760
    %1929 = vmatpush1.msra.mxu0 %v1928
    %v1930 = vand.u32 %v690, 4294901760
    %1931 = vmatprep.subr.mxu0 %v1930
    %v1932 = vand.u32 %v689, 4294901760
    %1933 = vmatpush1.msra.mxu0 %v1932
    %v1934 = vand.u32 %v692, 4294901760
    %1935 = vmatprep.subr.mxu0 %v1934
    %v1936 = vand.u32 %v691, 4294901760
    %1937 = vmatpush1.msra.mxu0 %v1936
    %v1938 = vand.u32 %v694, 4294901760
    %1939 = vmatprep.subr.mxu0 %v1938
    %v1940 = vand.u32 %v693, 4294901760
    %1941 = vmatpush1.msra.mxu0 %v1940
    %v1942 = vand.u32 %v696, 4294901760
    %1943 = vmatprep.subr.mxu0 %v1942
    %v1944 = vand.u32 %v695, 4294901760
    %1945 = vmatpush1.msra.mxu0 %v1944
    %v1946 = vand.u32 %v698, 4294901760
    %1947 = vmatprep.subr.mxu0 %v1946
    %v1948 = vand.u32 %v697, 4294901760
    %1949 = vmatpush1.msra.mxu0 %v1948
    %v1950 = vand.u32 %v700, 4294901760
    %1951 = vmatprep.subr.mxu0 %v1950
    %v1952 = vand.u32 %v699, 4294901760
    %1953 = vmatpush1.msra.mxu0 %v1952
    %v1954 = vand.u32 %v702, 4294901760
    %1955 = vmatprep.subr.mxu0 %v1954
    %v1956 = vand.u32 %v701, 4294901760
    %1957 = vmatpush1.msra.mxu0 %v1956
    %v1958 = vand.u32 %v704, 4294901760
    %1959 = vmatprep.subr.mxu0 %v1958
    %v1960 = vand.u32 %v703, 4294901760
    %1961 = vmatpush1.msra.mxu0 %v1960
    %v1962 = vand.u32 %v706, 4294901760
    %1963 = vmatprep.subr.mxu0 %v1962
    %v1964 = vand.u32 %v705, 4294901760
    %1965 = vmatpush1.msra.mxu0 %v1964
    %v1966 = vand.u32 %v708, 4294901760
    %1967 = vmatprep.subr.mxu0 %v1966
    %v1968 = vand.u32 %v707, 4294901760
    %1969 = vmatpush1.msra.mxu0 %v1968
    %v1970 = vand.u32 %v710, 4294901760
    %1971 = vmatprep.subr.mxu0 %v1970
    %v1972 = vand.u32 %v709, 4294901760
    %1973 = vmatpush1.msra.mxu0 %v1972
    %v1974 = vand.u32 %v712, 4294901760
    %1975 = vmatprep.subr.mxu0 %v1974
    %v1976 = vand.u32 %v711, 4294901760
    %1977 = vmatpush1.msra.mxu0 %v1976
    %v1978 = vand.u32 %v714, 4294901760
    %1979 = vmatprep.subr.mxu0 %v1978
    %v1980 = vand.u32 %v713, 4294901760
    %1981 = vmatpush1.msra.mxu0 %v1980
    %v1982 = vand.u32 %v716, 4294901760
    %1983 = vmatprep.subr.mxu0 %v1982
    %v1984 = vand.u32 %v715, 4294901760
    %1985 = vmatpush1.msra.mxu0 %v1984
    %v1986 = vand.u32 %v718, 4294901760
    %1987 = vmatprep.subr.mxu0 %v1986
    %v1988 = vand.u32 %v717, 4294901760
    %1989 = vmatpush1.msra.mxu0 %v1988
    %v1990 = vand.u32 %v720, 4294901760
    %1991 = vmatprep.subr.mxu0 %v1990
    %v1992 = vand.u32 %v719, 4294901760
    %1993 = vmatpush1.msra.mxu0 %v1992
    %v1994 = vand.u32 %v722, 4294901760
    %1995 = vmatprep.subr.mxu0 %v1994
    %v1996 = vand.u32 %v721, 4294901760
    %1997 = vmatpush1.msra.mxu0 %v1996
    %v1998 = vand.u32 %v658, 4294901760
    %1999 = vmatprep.mubr.f32.mxu0 %v1998
    %v2000 = vand.u32 %v657, 4294901760
    %2001 = vmatmul.mubr.f32.gmra.mrb[0].mxu0 %v2000
    %v2002 = vpop.f32.mrb[0].mxu0
    %v2003 = vadd.f32 %v1866, %v2002
    %v2004 = vpop.f32.mrb[0].mxu0
    %v2005 = vadd.f32 %v1868, %v2004
    %2006 = vdwg.mxu0
    %vm2007 = vcmp.eq.s32.totalorder %v644, 255
    %vm2008 = vcmp.eq.s32.totalorder %v645, 255
    %v2009 = vsel %vm2007, 1, 0
    %v2010 = vsel %vm2008, 1, 0
    %v2011 = vcvt.s32.f32 %v2009
    %v2012 = vcvt.s32.f32 %v2010
    %v2013 = vld [vmem:[#allocation3] sm:$0x3]
    %v2014 = vld [vmem:[#allocation4] sm:$0x3]
    %v2017 = vcombine.low %v2011, %v2012
    %v2019 = vunpack.c.l.s4 1966171168
    %v2020 = vunpack.c.0.s8 %v2019
    %v2021 = vlaneseq
    %v2022 = vshrl.u32 %v2021, 7
    %v2023 = vsub.s32 %v2020, %v2022
    %v2024 = vrot.slane %v2017, %v2023
    %v2026 = vunpack.c.l.s4 1966171168
    %v2027 = vunpack.c.0.s8 %v2026
    %v2028 = vlaneseq
    %v2029 = vshrl.u32 %v2028, 7
    %v2030 = vsub.s32 %v2027, %v2029
    %v2031 = vrot.slane %v2024, %v2030
    %v2033 = vmul.f32 %v2014, %v2031
    %v2035 = vlaneseq
    %v2036 = vshrl.u32 %v2035, 7
    %v2037 = vsub.s32 0, %v2036
    %v2038 = vrot.slane %v2033, %v2037
    %v2039 = vlaneseq
    %v2040 = vshrl.u32 %v2039, 7
    %v2041 = vsub.s32 1, %v2040
    %v2042 = vrot.slane %v2033, %v2041
    %vm2045 = vcmask 1040384
    %v2046 = vsel %vm2045, %v2038, 0.0
    %v2047 = vsel %vm2045, %v2042, 0.0
    %v2048 = vadd.f32 %v2046, %v2047
    %2049 = vadd.xlane.f32.xlu0 %v2048
    %v2050 = vpop.xlane.xlu0 %2049
    %v2052 = vlaneseq
    %v2053 = vshrl.u32 %v2052, 7
    %v2054 = vsub.s32 0, %v2053
    %v2055 = vrot.slane %v2013, %v2054
    %v2056 = vlaneseq
    %v2057 = vshrl.u32 %v2056, 7
    %v2058 = vsub.s32 1, %v2057
    %v2059 = vrot.slane %v2013, %v2058
    %v2062 = vmul.f32 %v2050, %v2055
    %v2063 = vmul.f32 %v2050, %v2059
    %v2064 = vadd.f32 %v2003, %v2062
    %v2065 = vadd.f32 %v2005, %v2063
    %v2068 = vcombine.low %v2064, %v2065
    %v2070 = vunpack.c.l.s4 1966171168
    %v2071 = vunpack.c.0.s8 %v2070
    %v2072 = vlaneseq
    %v2073 = vshrl.u32 %v2072, 7
    %v2074 = vsub.s32 %v2071, %v2073
    %v2075 = vrot.slane %v2068, %v2074
    %v2077 = vunpack.c.l.s4 1966171168
    %v2078 = vunpack.c.0.s8 %v2077
    %v2079 = vlaneseq
    %v2080 = vshrl.u32 %v2079, 7
    %v2081 = vsub.s32 %v2078, %v2080
    %v2082 = vrot.slane %v2075, %v2081
    %v2084 = vlaneseq
    %vm2085 = vcmp.ge.s32.totalorder %v2084, 0
    %vm2086 = vcmp.lt.s32.totalorder %v2084, 256
    %vm2087 = vmand %vm2085, %vm2086
    %2088 = vst.msk [vmem:[#allocation12] ss:$8 sm:$0x3] %vm2087, %v2082
    %2089 = vst.msk [vmem:[#allocation12] ss:$8 sm:$0x0] %vm2087, %v2082
    %v2090 = vmul.f32 %v2064, %v2011
    %v2091 = vmul.f32 %v2065, %v2012
    %v2092 = vsel %vm2045, %v2090, 0.0
    %v2093 = vsel %vm2045, %v2091, 0.0
    %v2094 = vadd.f32 %v2092, %v2093
    %2095 = vadd.xlane.f32.xlu0 %v2094
    %v2096 = vpop.xlane.xlu0 %2095
    %v2097 = vmul.f32 %v2096, %v2055
    %v2098 = vmul.f32 %v2096, %v2059
    %v2101 = vrot.slane %v2097, 7
    %v2102 = vrot.slane %v2098, 7
    %v2105 = vadd.f32 %v2003, %v2101
    %v2106 = vadd.f32 %v2005, %v2102
    %v2109 = vcombine.low %v2105, %v2106
    %v2111 = vunpack.c.l.s4 1966171168
    %v2112 = vunpack.c.0.s8 %v2111
    %v2113 = vlaneseq
    %v2114 = vshrl.u32 %v2113, 7
    %v2115 = vsub.s32 %v2112, %v2114
    %v2116 = vrot.slane %v2109, %v2115
    %v2117 = vcombine.high %v2116, %v2116
    %v2119 = vunpack.c.l.s4 1966171168
    %v2120 = vunpack.c.0.s8 %v2119
    %v2121 = vlaneseq
    %v2122 = vshrl.u32 %v2121, 7
    %v2123 = vsub.s32 %v2120, %v2122
    %v2124 = vrot.slane %v2117, %v2123
    %s2126 = scalar_lea.vmem [#allocation12], 1
    %2127 = vst.msk [vmem:[%s2126] ss:$8 sm:$0x3] %vm2087, %v2124
    %2128 = vst.msk [vmem:[%s2126] ss:$8 sm:$0x0] %vm2087, %v2124
    %v2129 = vmul.f32 %v2105, %v2011
    %v2130 = vmul.f32 %v2106, %v2012
    %vm2131 = vcmask 1041409
    %v2132 = vsel %vm2131, %v2129, 0.0
    %v2133 = vsel %vm2131, %v2130, 0.0
    %v2134 = vadd.f32 %v2132, %v2133
    %2135 = vadd.xlane.f32.xlu0 %v2134
    %v2136 = vpop.xlane.xlu0 %2135
    %v2137 = vmul.f32 %v2136, %v2055
    %v2138 = vmul.f32 %v2136, %v2059
    %v2141 = vrot.slane %v2137, 7
    %v2142 = vrot.slane %v2138, 7
    %v2145 = vadd.f32 %v2003, %v2141
    %v2146 = vadd.f32 %v2005, %v2142
    %v2149 = vcombine.low %v2145, %v2146
    %v2151 = vunpack.c.l.s4 1966171168
    %v2152 = vunpack.c.0.s8 %v2151
    %v2153 = vlaneseq
    %v2154 = vshrl.u32 %v2153, 7
    %v2155 = vsub.s32 %v2152, %v2154
    %v2156 = vrot.slane %v2149, %v2155
    %v2158 = vunpack.c.l.s4 1966171168
    %v2159 = vunpack.c.0.s8 %v2158
    %v2160 = vlaneseq
    %v2161 = vshrl.u32 %v2160, 7
    %v2162 = vsub.s32 %v2159, %v2161
    %v2163 = vrot.slane %v2156, %v2162
    %v2164 = vcombine.high %v2163, %v2163
    %s2166 = scalar_lea.vmem [#allocation12], 2
    %2167 = vst.msk [vmem:[%s2166] ss:$8 sm:$0x3] %vm2087, %v2164
    %2168 = vst.msk [vmem:[%s2166] ss:$8 sm:$0x0] %vm2087, %v2164
    %v2169 = vmul.f32 %v2145, %v2011
    %v2170 = vmul.f32 %v2146, %v2012
    %vm2171 = vcmask 1042434
    %v2172 = vsel %vm2171, %v2169, 0.0
    %v2173 = vsel %vm2171, %v2170, 0.0
    %v2174 = vadd.f32 %v2172, %v2173
    %2175 = vadd.xlane.f32.xlu0 %v2174
    %v2176 = vpop.xlane.xlu0 %2175
    %v2177 = vmul.f32 %v2176, %v2055
    %v2178 = vmul.f32 %v2176, %v2059
    %v2181 = vrot.slane %v2177, 7
    %v2182 = vrot.slane %v2178, 7
    %v2185 = vadd.f32 %v2003, %v2181
    %v2186 = vadd.f32 %v2005, %v2182
    %v2189 = vcombine.low %v2185, %v2186
    %v2191 = vunpack.c.l.s4 1966171168
    %v2192 = vunpack.c.0.s8 %v2191
    %v2193 = vlaneseq
    %v2194 = vshrl.u32 %v2193, 7
    %v2195 = vsub.s32 %v2192, %v2194
    %v2196 = vrot.slane %v2189, %v2195
    %v2197 = vcombine.high %v2196, %v2196
    %v2199 = vunpack.c.l.s4 1966171168
    %v2200 = vunpack.c.0.s8 %v2199
    %v2201 = vlaneseq
    %v2202 = vshrl.u32 %v2201, 7
    %v2203 = vsub.s32 %v2200, %v2202
    %v2204 = vrot.slane %v2197, %v2203
    %v2205 = vcombine.high %v2204, %v2204
    %s2207 = scalar_lea.vmem [#allocation12], 3
    %2208 = vst.msk [vmem:[%s2207] ss:$8 sm:$0x3] %vm2087, %v2205
    %2209 = vst.msk [vmem:[%s2207] ss:$8 sm:$0x0] %vm2087, %v2205
    %v2210 = vmul.f32 %v2185, %v2011
    %v2211 = vmul.f32 %v2186, %v2012
    %vm2212 = vcmask 1043459
    %v2213 = vsel %vm2212, %v2210, 0.0
    %v2214 = vsel %vm2212, %v2211, 0.0
    %v2215 = vadd.f32 %v2213, %v2214
    %2216 = vadd.xlane.f32.xlu0 %v2215
    %v2217 = vpop.xlane.xlu0 %2216
    %v2218 = vmul.f32 %v2217, %v2055
    %v2219 = vmul.f32 %v2217, %v2059
    %v2222 = vrot.slane %v2218, 7
    %v2223 = vrot.slane %v2219, 7
    %v2226 = vadd.f32 %v2003, %v2222
    %v2227 = vadd.f32 %v2005, %v2223
    %v2230 = vcombine.high %v2226, %v2227
    %v2232 = vunpack.c.l.s4 1966171168
    %v2233 = vunpack.c.0.s8 %v2232
    %v2234 = vlaneseq
    %v2235 = vshrl.u32 %v2234, 7
    %v2236 = vsub.s32 %v2233, %v2235
    %v2237 = vrot.slane %v2230, %v2236
    %v2239 = vunpack.c.l.s4 1966171168
    %v2240 = vunpack.c.0.s8 %v2239
    %v2241 = vlaneseq
    %v2242 = vshrl.u32 %v2241, 7
    %v2243 = vsub.s32 %v2240, %v2242
    %v2244 = vrot.slane %v2237, %v2243
    %s2246 = scalar_lea.vmem [#allocation12], 4
    %2247 = vst.msk [vmem:[%s2246] ss:$8 sm:$0x3] %vm2087, %v2244
    %2248 = vst.msk [vmem:[%s2246] ss:$8 sm:$0x0] %vm2087, %v2244
    %v2249 = vmul.f32 %v2226, %v2011
    %v2250 = vmul.f32 %v2227, %v2012
    %vm2251 = vcmask 1044484
    %v2252 = vsel %vm2251, %v2249, 0.0
    %v2253 = vsel %vm2251, %v2250, 0.0
    %v2254 = vadd.f32 %v2252, %v2253
    %2255 = vadd.xlane.f32.xlu0 %v2254
    %v2256 = vpop.xlane.xlu0 %2255
    %v2257 = vmul.f32 %v2256, %v2055
    %v2258 = vmul.f32 %v2256, %v2059
    %v2261 = vrot.slane %v2257, 7
    %v2262 = vrot.slane %v2258, 7
    %v2265 = vadd.f32 %v2003, %v2261
    %v2266 = vadd.f32 %v2005, %v2262
    %v2269 = vcombine.high %v2265, %v2266
    %v2271 = vunpack.c.l.s4 1966171168
    %v2272 = vunpack.c.0.s8 %v2271
    %v2273 = vlaneseq
    %v2274 = vshrl.u32 %v2273, 7
    %v2275 = vsub.s32 %v2272, %v2274
    %v2276 = vrot.slane %v2269, %v2275
    %v2277 = vcombine.high %v2276, %v2276
    %v2279 = vunpack.c.l.s4 1966171168
    %v2280 = vunpack.c.0.s8 %v2279
    %v2281 = vlaneseq
    %v2282 = vshrl.u32 %v2281, 7
    %v2283 = vsub.s32 %v2280, %v2282
    %v2284 = vrot.slane %v2277, %v2283
    %s2286 = scalar_lea.vmem [#allocation12], 5
    %2287 = vst.msk [vmem:[%s2286] ss:$8 sm:$0x3] %vm2087, %v2284
    %2288 = vst.msk [vmem:[%s2286] ss:$8 sm:$0x0] %vm2087, %v2284
    %v2289 = vmul.f32 %v2265, %v2011
    %v2290 = vmul.f32 %v2266, %v2012
    %vm2291 = vcmask 1045509
    %v2292 = vsel %vm2291, %v2289, 0.0
    %v2293 = vsel %vm2291, %v2290, 0.0
    %v2294 = vadd.f32 %v2292, %v2293
    %2295 = vadd.xlane.f32.xlu0 %v2294
    %v2296 = vpop.xlane.xlu0 %2295
    %v2297 = vmul.f32 %v2296, %v2055
    %v2298 = vmul.f32 %v2296, %v2059
    %v2301 = vrot.slane %v2297, 7
    %v2302 = vrot.slane %v2298, 7
    %v2305 = vadd.f32 %v2003, %v2301
    %v2306 = vadd.f32 %v2005, %v2302
    %v2309 = vcombine.high %v2305, %v2306
    %v2311 = vunpack.c.l.s4 1966171168
    %v2312 = vunpack.c.0.s8 %v2311
    %v2313 = vlaneseq
    %v2314 = vshrl.u32 %v2313, 7
    %v2315 = vsub.s32 %v2312, %v2314
    %v2316 = vrot.slane %v2309, %v2315
    %v2318 = vunpack.c.l.s4 1966171168
    %v2319 = vunpack.c.0.s8 %v2318
    %v2320 = vlaneseq
    %v2321 = vshrl.u32 %v2320, 7
    %v2322 = vsub.s32 %v2319, %v2321
    %v2323 = vrot.slane %v2316, %v2322
    %v2324 = vcombine.high %v2323, %v2323
    %s2326 = scalar_lea.vmem [#allocation12], 6
    %2327 = vst.msk [vmem:[%s2326] ss:$8 sm:$0x3] %vm2087, %v2324
    %2328 = vst.msk [vmem:[%s2326] ss:$8 sm:$0x0] %vm2087, %v2324
    %v2329 = vmul.f32 %v2305, %v2011
    %v2330 = vmul.f32 %v2306, %v2012
    %vm2331 = vcmask 1046534
    %v2332 = vsel %vm2331, %v2329, 0.0
    %v2333 = vsel %vm2331, %v2330, 0.0
    %v2334 = vadd.f32 %v2332, %v2333
    %2335 = vadd.xlane.f32.xlu0 %v2334
    %v2336 = vpop.xlane.xlu0 %2335
    %v2337 = vmul.f32 %v2336, %v2055
    %v2338 = vmul.f32 %v2336, %v2059
    %v2341 = vrot.slane %v2337, 7
    %v2342 = vrot.slane %v2338, 7
    %v2345 = vadd.f32 %v2003, %v2341
    %v2346 = vadd.f32 %v2005, %v2342
    %v2349 = vcombine.high %v2345, %v2346
    %v2351 = vunpack.c.l.s4 1966171168
    %v2352 = vunpack.c.0.s8 %v2351
    %v2353 = vlaneseq
    %v2354 = vshrl.u32 %v2353, 7
    %v2355 = vsub.s32 %v2352, %v2354
    %v2356 = vrot.slane %v2349, %v2355
    %v2357 = vcombine.high %v2356, %v2356
    %v2359 = vunpack.c.l.s4 1966171168
    %v2360 = vunpack.c.0.s8 %v2359
    %v2361 = vlaneseq
    %v2362 = vshrl.u32 %v2361, 7
    %v2363 = vsub.s32 %v2360, %v2362
    %v2364 = vrot.slane %v2357, %v2363
    %v2365 = vcombine.high %v2364, %v2364
    %s2367 = scalar_lea.vmem [#allocation12], 7
    %2368 = vst.msk [vmem:[%s2367] ss:$8 sm:$0x3] %vm2087, %v2365
    %2369 = vst.msk [vmem:[%s2367] ss:$8 sm:$0x0] %vm2087, %v2365
    %2370 = vst.msk [vmem:[#allocation4] sm:$0x3] %vm2087, %v2365
    // Predicated region
    $region30: #{tpu_custom_call.1} parent=1 // pred_check
      _
    $region31: #{tpu_custom_call.1} parent=1 // pred_check_branch
      %2372 = sbr.rel (0) target = $region33
    $region32: #{tpu_custom_call.1} parent=1 // pred_region
      %s2374 = ssub.s32 256, 256
      %2375 = vsyncadd [#allocation11], %s2374
      %s2377 = sshll.u32 [#allocation12], 4
      %s2378 = int_to_ptr.vmem [resolvable:$true] %s2377
      %2380 = dma.vmem_to_hbm [thread:$0]  %s2378, 256, %s5, [#allocation11]
    $region33: #{tpu_custom_call.1} parent=1 // pred_fallthru
      _
    // Predicated region
    $region34: #{tpu_custom_call.1} parent=1 // pred_check
      _
    $region35: #{tpu_custom_call.1} parent=1 // pred_check_branch
      %2382 = sbr.rel (0) target = $region37
    $region36: #{tpu_custom_call.1} parent=1 // pred_region
      %2383 = dma.done [#allocation11], 256
    $region37: #{tpu_custom_call.1} parent=1 // pred_fallthru
      _
    %2384 = vsyncpa [#allocation10], 1
    %2385 = vsyncpa [#allocation11], 1

</llo_original>
